<compile_context>
chip_gen: v5e
topology: v5e:2x2
jax: 0.10.0
libtpu: 0.0.40
codegen_flags: <defaults>
</compile_context>

<pallas_src>
import functools

import jax
import jax.numpy as jnp
from jax import lax
from jax.experimental import pallas as pl
from jax.experimental.pallas import tpu as pltpu

EPS = 1e-5
K = 3  # kernel size


def _vmem_capacity_bytes() -> int:
    try:
        return int(pltpu.get_tpu_info().vmem_capacity_bytes)
    except Exception:
        return 64 * 1024 * 1024  # conservative: v7x per-TensorCore VMEM


# --------------------------------------------------------------------------
# Shared math: combine the 9 per-tap matmul columns into the 4 output phases.
# --------------------------------------------------------------------------
def _phase_combine(y, yh, W, C):
    # y  : (M, 9C) f32  per-tap matmul result, M = rows*W flat positions
    # yh : (W, 3C) f32  halo-row (next image row) result for the row/diag taps
    # returns (M, 4C) f32, phases packed as col = (2*dy + dx)*C + co
    M = y.shape[0]
    col = lax.broadcasted_iota(jnp.int32, (M, 1), 0) % W
    not_last_col = col != (W - 1)

    # x[r, c+1] taps -> shift result by one flat position, zero at c = W-1
    s_col = jnp.concatenate(
        [y[1:, 4 * C:6 * C], jnp.zeros((1, 2 * C), jnp.float32)], axis=0)
    s_col = jnp.where(not_last_col, s_col, 0.0)
    # x[r+1, c] taps -> shift by one image row (W flat positions); halo fills the tail
    s_row = jnp.concatenate([y[W:, 6 * C:8 * C], yh[:, 0:2 * C]], axis=0)
    # x[r+1, c+1] taps -> shift by W + 1, zero at c = W-1
    s_diag = jnp.concatenate(
        [y[W + 1:, 8 * C:9 * C], yh[:, 2 * C:3 * C],
         jnp.zeros((1, C), jnp.float32)], axis=0)
    s_diag = jnp.where(not_last_col, s_diag, 0.0)

    p00 = y[:, 0:C]
    p01 = y[:, C:2 * C] + s_col[:, 0:C]
    p10 = y[:, 2 * C:3 * C] + s_row[:, 0:C]
    p11 = y[:, 3 * C:4 * C] + s_col[:, C:2 * C] + s_row[:, C:2 * C] + s_diag
    return jnp.concatenate([p00, p01, p10, p11], axis=1)  # (M, 4C)


# --------------------------------------------------------------------------
# Fused single-pass kernel: conv + instance-norm + ReLU, one HBM write.
# --------------------------------------------------------------------------
def _fused_kernel(x_ref, w_ref, o_ref, *, W):
    # x_ref: (HW, Cin) bf16, w_ref: (Cin, 9C) bf16, o_ref: (HW, 4C) out dtype
    hw = x_ref.shape[0]
    C = w_ref.shape[1] // 9

    y = jnp.dot(x_ref[...], w_ref[...], preferred_element_type=jnp.float32)  # (HW, 9C)
    # rows below the image contribute zero (no halo needed in the fused path)
    out = _phase_combine(y, jnp.zeros((W, 3 * C), jnp.float32), W, C)        # (HW, 4C)

    # Instance-norm stats over the full image; the 4 phases share channels.
    s1 = jnp.sum(out, axis=0, keepdims=True)                                 # (1, 4C)
    s2 = jnp.sum(out * out, axis=0, keepdims=True)
    s1c = s1[:, 0:C] + s1[:, C:2 * C] + s1[:, 2 * C:3 * C] + s1[:, 3 * C:4 * C]
    s2c = s2[:, 0:C] + s2[:, C:2 * C] + s2[:, 2 * C:3 * C] + s2[:, 3 * C:4 * C]
    cnt = jnp.float32(4 * hw)                                                # = Ho*Wo
    mean = s1c / cnt
    var = jnp.maximum(s2c / cnt - mean * mean, 0.0)                          # biased
    rstd = lax.rsqrt(var + EPS)
    scale = jnp.concatenate([rstd] * 4, axis=1)                              # (1, 4C)
    shift = jnp.concatenate([mean * rstd] * 4, axis=1)

    o_ref[...] = jnp.maximum(out * scale - shift, 0.0).astype(o_ref.dtype)


# --------------------------------------------------------------------------
# Two-pass fallback, pass 1: conv + per-tile stats (bf16 intermediate).
# --------------------------------------------------------------------------
def _conv_stats_kernel(x_ref, h_ref, w_ref, y_ref, stats_ref):
    # x_ref : (TR*W, Cin) bf16,  h_ref : (W, Cin) bf16 (first row of next tile)
    # w_ref : (Cin, 9C) bf16
    # y_ref : (TR*W, 4C) bf16,   stats_ref : (2, 4C) f32 [sum; sumsq]
    W = h_ref.shape[0]
    C = w_ref.shape[1] // 9
    w = w_ref[...]

    y = jnp.dot(x_ref[...], w, preferred_element_type=jnp.float32)            # (M, 9C)
    yh = jnp.dot(h_ref[...], w[:, 6 * C:], preferred_element_type=jnp.float32)  # (W, 3C)
    # Last tile has no next row: zero the halo contribution (the clamped halo
    # block fetch is then irrelevant garbage that never reaches the result).
    keep = (pl.program_id(1) != pl.num_programs(1) - 1).astype(jnp.float32)
    yh = yh * keep

    out = _phase_combine(y, yh, W, C)                                          # (M, 4C) f32
    y_ref[...] = out.astype(y_ref.dtype)          # bf16 intermediate in HBM
    stats_ref[...] = jnp.concatenate(             # stats from the unrounded f32
        [jnp.sum(out, axis=0, keepdims=True),
         jnp.sum(out * out, axis=0, keepdims=True)], axis=0)


# --------------------------------------------------------------------------
# Two-pass fallback, pass 2: fused scale/shift + ReLU.
# --------------------------------------------------------------------------
def _norm_relu_kernel(y_ref, ss_ref, o_ref):
    scale = ss_ref[0:1, :]
    shift = ss_ref[1:2, :]
    o_ref[...] = jnp.maximum(
        y_ref[...].astype(jnp.float32) * scale - shift, 0.0).astype(o_ref.dtype)


def _pick_tile_rows(N, H, W, cin, cout, budget_bytes):
    """Largest row-tile (divisor of H, >=2) fitting the per-step byte budget,
    preferring an even N*T grid so v7x's two TensorCores stay balanced."""
    valid = [tr for tr in range(2, H + 1) if H % tr == 0 and (tr * W) % 8 == 0]
    if not valid:
        return H

    def per_step(tr):  # double-buffered x tile + halo + bf16 conv_out tile + stats
        return 2 * (tr * W * cin * 2 + W * cin * 2 + tr * W * 4 * cout * 2
                    + 2 * 4 * cout * 4)

    fitting = [tr for tr in valid if per_step(tr) <= budget_bytes] or valid[:1]
    return max(fitting, key=lambda tr: (((N * (H // tr)) % 2) == 0, tr))


def upblock_forward(x_nchw: jax.Array, wt: jax.Array, *,
                    out_dtype=jnp.bfloat16, tile_rows=None,
                    force_two_pass=False) -> jax.Array:
    """x_nchw: (N, 2*nf, H, W);  wt: ConvTranspose2d weight (2*nf, nf//2, 3, 3)."""
    N, Cin, H, W = x_nchw.shape
    assert wt.shape[0] == Cin and wt.shape[2] == K and wt.shape[3] == K
    C = wt.shape[1]                              # Cout = nf // 2
    assert W % 8 == 0, "image width must be a multiple of 8"
    assert H >= 2

    cap = _vmem_capacity_bytes()
    vmem_limit = min(cap * 3 // 4, 96 * 1024 * 1024)      # 48 MiB on v7x, 96 MiB on v5e/v6e
    tile_budget = (4 << 20) if cap <= (64 << 20) else (8 << 20)

    # NHWC bf16 flattened input.  No host-side zero-row pad any more: XLA fuses
    # the transpose + cast into a single copy.
    HW = H * W
    x = jnp.transpose(x_nchw, (0, 2, 3, 1)).astype(jnp.bfloat16).reshape(N, HW, Cin)

    # Pack the 9 taps along the matmul-N dimension (used directly, no flip):
    #  [center taps of phases 00,01,10,11 | col-shift taps (01,11) |
    #   row-shift taps (10,11) | diagonal tap (11)]
    taps = [(1, 1), (1, 2), (2, 1), (2, 2), (1, 0), (2, 0), (0, 1), (0, 2), (0, 0)]
    w_all = jnp.concatenate([wt[:, :, ky, kx] for ky, kx in taps],
                            axis=1).astype(jnp.bfloat16)                      # (Cin, 9C)

    # Fused-path working-set estimate (blocks double-buffered + f32 temporaries).
    out_isz = jnp.dtype(out_dtype).itemsize
    fused_bytes = (2 * HW * Cin * 2 + 2 * HW * 4 * C * out_isz
                   + HW * 9 * C * 4 + HW * 4 * C * 4 + Cin * 9 * C * 2)
    use_fused = (not force_two_pass) and (2 * fused_bytes <= vmem_limit)

    if use_fused:
        # -------- single pass: conv result never leaves VMEM --------------
        out_flat = pl.pallas_call(
            functools.partial(_fused_kernel, W=W),
            out_shape=jax.ShapeDtypeStruct((N, HW, 4 * C), out_dtype),
            grid_spec=pltpu.PrefetchScalarGridSpec(
                num_scalar_prefetch=0,
                grid=(N,),
                in_specs=[
                    pl.BlockSpec((None, HW, Cin), lambda n: (n, 0, 0)),
                    pl.BlockSpec((Cin, 9 * C), lambda n: (0, 0)),
                ],
                out_specs=pl.BlockSpec((None, HW, 4 * C), lambda n: (n, 0, 0)),
            ),
            compiler_params=pltpu.CompilerParams(
                dimension_semantics=("parallel",),
                vmem_limit_bytes=vmem_limit),
        )(x, w_all)
    else:
        # -------- two-pass fallback (large images) -------------------------
        TR = tile_rows if tile_rows is not None else _pick_tile_rows(
            N, H, W, Cin, C, tile_budget)
        assert H % TR == 0 and TR >= 2 and (TR * W) % 8 == 0, (TR, H, W)
        T = H // TR
        TRW = TR * W

        conv_out, stats = pl.pallas_call(
            _conv_stats_kernel,
            out_shape=(
                jax.ShapeDtypeStruct((N, HW, 4 * C), jnp.bfloat16),
                jax.ShapeDtypeStruct((N, T, 2, 4 * C), jnp.float32),
            ),
            grid_spec=pltpu.PrefetchScalarGridSpec(
                num_scalar_prefetch=0,
                grid=(N, T),
                in_specs=[
                    pl.BlockSpec((None, TRW, Cin), lambda n, t: (n, t, 0)),
                    # halo = first row of the next tile; clamped for the last
                    # tile (contribution is zeroed in-kernel).
                    pl.BlockSpec((None, W, Cin),
                                 lambda n, t: (n, jnp.minimum((t + 1) * TR, H - 1), 0)),
                    pl.BlockSpec((Cin, 9 * C), lambda n, t: (0, 0)),
                ],
                out_specs=[
                    pl.BlockSpec((None, TRW, 4 * C), lambda n, t: (n, t, 0)),
                    pl.BlockSpec((None, None, 2, 4 * C), lambda n, t: (n, t, 0, 0)),
                ],
            ),
            compiler_params=pltpu.CompilerParams(
                dimension_semantics=("parallel", "parallel"),
                vmem_limit_bytes=vmem_limit),
        )(x, x, w_all)

        # Tiny O(N*Cout) finalization of the two-pass instance norm.
        s = jnp.sum(stats, axis=1)                              # (N, 2, 4C)
        s1 = jnp.sum(s[:, 0].reshape(N, 4, C), axis=1)          # (N, C), sum over phases
        s2 = jnp.sum(s[:, 1].reshape(N, 4, C), axis=1)
        cnt = jnp.float32(4 * HW)
        mean = s1 / cnt
        var = jnp.maximum(s2 / cnt - mean * mean, 0.0)
        rstd = lax.rsqrt(var + EPS)
        ss = jnp.stack([jnp.tile(rstd, (1, 4)),                 # scale
                        jnp.tile(mean * rstd, (1, 4))], axis=1)  # shift -> (N, 2, 4C)

        out_flat = pl.pallas_call(
            _norm_relu_kernel,
            out_shape=jax.ShapeDtypeStruct((N, HW, 4 * C), out_dtype),
            grid_spec=pltpu.PrefetchScalarGridSpec(
                num_scalar_prefetch=0,
                grid=(N, T),
                in_specs=[
                    pl.BlockSpec((None, TRW, 4 * C), lambda n, t: (n, t, 0)),
                    pl.BlockSpec((None, 2, 4 * C), lambda n, t: (n, 0, 0)),
                ],
                out_specs=pl.BlockSpec((None, TRW, 4 * C), lambda n, t: (n, t, 0)),
            ),
            compiler_params=pltpu.CompilerParams(
                dimension_semantics=("parallel", "parallel"),
                vmem_limit_bytes=vmem_limit),
        )(conv_out, ss)

    # Phase de-interleave (col = (2*dy+dx)*C + co) fused with the NHWC->NCHW
    # conversion; reads bf16 when out_dtype=bf16 (half the bytes of before).
    # TODO(synk): fold this de-interleave into the kernel's out_spec as an
    # NCHW block once the required multi-minor-dim transpose lowers reliably.
    out = out_flat.reshape(N, H, W, 2, 2, C)                 # (n, r, c, dy, dx, co)
    out = jnp.transpose(out, (0, 5, 1, 3, 2, 4)).reshape(N, C, 2 * H, 2 * W)
    return out


def upblock_reference(x_nchw: jax.Array, wt: jax.Array) -> jax.Array:
    """Pure-JAX reference (XLA conv).  Inputs pre-rounded to bf16 so the only
    difference vs the kernel is accumulation order / intermediate rounding."""
    xr = x_nchw.astype(jnp.bfloat16).astype(jnp.float32)
    wr = wt.astype(jnp.bfloat16).astype(jnp.float32)
    w_oihw = jnp.transpose(wr[:, :, ::-1, ::-1], (1, 0, 2, 3))
    y = lax.conv_general_dilated(
        xr, w_oihw, window_strides=(1, 1), padding=((1, 2), (1, 2)),
        lhs_dilation=(2, 2), dimension_numbers=("NCHW", "OIHW", "NCHW"))
    mean = jnp.mean(y, axis=(2, 3), keepdims=True)
    var = jnp.mean((y - mean) ** 2, axis=(2, 3), keepdims=True)
    return jnp.maximum((y - mean) * lax.rsqrt(var + EPS), 0.0)


if __name__ == "__main__":
    nf = 8
    N, H, W = 2, 16, 16
    Cin, Cout = 2 * nf, nf // 2        # 16, 4

    key = jax.random.PRNGKey(0)
    kx_, kw_ = jax.random.split(key)
    x = jax.random.normal(kx_, (N, Cin, H, W), dtype=jnp.float32)
    # ConvTranspose2d weight shape: (in_channels, out_channels, kH, kW)
    wt = 0.1 * jax.random.normal(kw_, (Cin, Cout, K, K), dtype=jnp.float32)

    ref = upblock_reference(x, wt)

    # Fused single-pass path, f32 output: tight check (no bf16 rounding of the result).
    out_f32 = upblock_forward(x, wt, out_dtype=jnp.float32)
    jax.block_until_ready(out_f32)
    assert out_f32.shape == (N, Cout, 2 * H, 2 * W), out_f32.shape
    err = float(jnp.max(jnp.abs(out_f32 - ref)))
    assert err < 5e-3, f"fused/f32 mismatch vs reference: {err}"

    # Fused path with the default bf16 output (perf configuration).
    out_bf16 = upblock_forward(x, wt)
    jax.block_until_ready(out_bf16)
    err = float(jnp.max(jnp.abs(out_bf16.astype(jnp.float32) - ref)))
    assert err < 3e-2, f"fused/bf16 mismatch vs reference: {err}"

    # Two-pass fallback: exercises row tiling, clamped+masked halo and the
    # bf16 conv_out intermediate (looser tolerance due to that rounding).
    out_tp = upblock_forward(x, wt, force_two_pass=True, tile_rows=8,
                             out_dtype=jnp.float32)
    jax.block_until_ready(out_tp)
    err = float(jnp.max(jnp.abs(out_tp - ref)))
    assert err < 2.5e-2, f"two-pass mismatch vs reference: {err}"

    print("KERNEL_OK")
</pallas_src>

<mosaic_0001>
module attributes {stable_mosaic.version = 11 : i64} {
  func.func @_fused_kernel(%arg0: i32, %arg1: memref<1x256x16xbf16, #tpu.memory_space<vmem>>, %arg2: memref<16x36xbf16, #tpu.memory_space<vmem>>, %arg3: memref<1x256x16xf32, #tpu.memory_space<vmem>>) attributes {dimension_semantics = [#tpu.dimension_semantics<parallel>], iteration_bounds = array<i64: 2>, scalar_prefetch = 0 : i64, scratch_operands = 0 : i64, tpu.core_type = #tpu.core_type<tc>, window_params = [{transform_indices = @transform_0, window_bounds = array<i64: 1, 256, 16>}, {pipeline_mode = #tpu.pipeline_mode<synchronous>, transform_indices = @transform_1, window_bounds = array<i64: 16, 36>}, {transform_indices = @transform_2, window_bounds = array<i64: 1, 256, 16>}]} {
    %c0 = arith.constant 0 : index
    %c0_0 = arith.constant 0 : index
    %c0_1 = arith.constant 0 : index
    %0 = vector.load %arg1[%c0, %c0_0, %c0_1] : memref<1x256x16xbf16, #tpu.memory_space<vmem>>, vector<1x256x16xbf16>
    %1 = vector.shape_cast %0 : vector<1x256x16xbf16> to vector<256x16xbf16>
    %c0_2 = arith.constant 0 : index
    %c0_3 = arith.constant 0 : index
    %2 = vector.load %arg2[%c0_2, %c0_3] : memref<16x36xbf16, #tpu.memory_space<vmem>>, vector<16x36xbf16>
    %cst = arith.constant dense<0.000000e+00> : vector<256x36xf32>
    %3 = tpu.matmul %1, %2, %cst {dimension_numbers = #tpu.dot_dimension_numbers<[1], [0], [0], [1], [0, 0, 1, 1], [], []>} : vector<256x16xbf16>, vector<16x36xbf16>, vector<256x36xf32> -> vector<256x36xf32>
    %cst_4 = arith.constant 0.000000e+00 : f32
    %4 = vector.broadcast %cst_4 : f32 to vector<16x12xf32>
    %5 = tpu.iota {dimensions = array<i32: 0>} : vector<256x1xi32>
    %c16_i32 = arith.constant 16 : i32
    %c0_i32 = arith.constant 0 : i32
    %6 = arith.cmpi eq, %c16_i32, %c0_i32 : i32
    %c1_i32 = arith.constant 1 : i32
    %7 = arith.select %6, %c1_i32, %c16_i32 : i32
    %8 = vector.broadcast %7 : i32 to vector<256x1xi32>
    %9 = arith.remsi %5, %8 : vector<256x1xi32>
    %c0_i32_5 = arith.constant 0 : i32
    %10 = vector.broadcast %c0_i32_5 : i32 to vector<256x1xi32>
    %11 = arith.cmpi ne, %9, %10 : vector<256x1xi32>
    %c0_i32_6 = arith.constant 0 : i32
    %12 = vector.broadcast %c0_i32_6 : i32 to vector<256x1xi32>
    %13 = arith.cmpi slt, %9, %12 : vector<256x1xi32>
    %c0_i32_7 = arith.constant 0 : i32
    %14 = arith.cmpi slt, %7, %c0_i32_7 : i32
    %15 = vector.broadcast %14 : i1 to vector<256x1xi1>
    %16 = vector.broadcast %15 : vector<256x1xi1> to vector<256x1xi1>
    %17 = arith.xori %13, %16 : vector<256x1xi1>
    %18 = arith.andi %17, %11 : vector<256x1xi1>
    %19 = vector.broadcast %7 : i32 to vector<256x1xi32>
    %20 = arith.addi %9, %19 : vector<256x1xi32>
    %21 = arith.select %18, %20, %9 : vector<256x1xi1>, vector<256x1xi32>
    %c15_i32 = arith.constant 15 : i32
    %22 = vector.broadcast %c15_i32 : i32 to vector<256x1xi32>
    %23 = arith.cmpi ne, %21, %22 : vector<256x1xi32>
    %24 = vector.extract_strided_slice %3 {offsets = [1, 16], sizes = [255, 8], strides = [1, 1]} : vector<256x36xf32> to vector<255x8xf32>
    %cst_8 = arith.constant 0.000000e+00 : f32
    %25 = vector.broadcast %cst_8 : f32 to vector<1x8xf32>
    %26 = tpu.concatenate %24, %25 in 0 : vector<255x8xf32>, vector<1x8xf32> -> vector<256x8xf32>
    %cst_9 = arith.constant 0.000000e+00 : f32
    %27 = vector.shape_cast %23 : vector<256x1xi1> to vector<256x1xi1>
    %28 = vector.broadcast %27 : vector<256x1xi1> to vector<256x8xi1>
    %29 = vector.broadcast %cst_9 : f32 to vector<256x8xf32>
    %30 = arith.select %28, %26, %29 : vector<256x8xi1>, vector<256x8xf32>
    %31 = vector.extract_strided_slice %3 {offsets = [16, 24], sizes = [240, 8], strides = [1, 1]} : vector<256x36xf32> to vector<240x8xf32>
    %32 = vector.extract_strided_slice %4 {offsets = [0, 0], sizes = [16, 8], strides = [1, 1]} : vector<16x12xf32> to vector<16x8xf32>
    %33 = tpu.concatenate %31, %32 in 0 : vector<240x8xf32>, vector<16x8xf32> -> vector<256x8xf32>
    %34 = vector.extract_strided_slice %3 {offsets = [17, 32], sizes = [239, 4], strides = [1, 1]} : vector<256x36xf32> to vector<239x4xf32>
    %35 = vector.extract_strided_slice %4 {offsets = [0, 8], sizes = [16, 4], strides = [1, 1]} : vector<16x12xf32> to vector<16x4xf32>
    %cst_10 = arith.constant 0.000000e+00 : f32
    %36 = vector.broadcast %cst_10 : f32 to vector<1x4xf32>
    %37 = tpu.concatenate %34, %35, %36 in 0 : vector<239x4xf32>, vector<16x4xf32>, vector<1x4xf32> -> vector<256x4xf32>
    %cst_11 = arith.constant 0.000000e+00 : f32
    %38 = vector.shape_cast %23 : vector<256x1xi1> to vector<256x1xi1>
    %39 = vector.broadcast %38 : vector<256x1xi1> to vector<256x4xi1>
    %40 = vector.broadcast %cst_11 : f32 to vector<256x4xf32>
    %41 = arith.select %39, %37, %40 : vector<256x4xi1>, vector<256x4xf32>
    %42 = vector.extract_strided_slice %3 {offsets = [0, 0], sizes = [256, 4], strides = [1, 1]} : vector<256x36xf32> to vector<256x4xf32>
    %43 = vector.extract_strided_slice %3 {offsets = [0, 4], sizes = [256, 4], strides = [1, 1]} : vector<256x36xf32> to vector<256x4xf32>
    %44 = vector.extract_strided_slice %30 {offsets = [0, 0], sizes = [256, 4], strides = [1, 1]} : vector<256x8xf32> to vector<256x4xf32>
    %45 = arith.addf %43, %44 : vector<256x4xf32>
    %46 = vector.extract_strided_slice %3 {offsets = [0, 8], sizes = [256, 4], strides = [1, 1]} : vector<256x36xf32> to vector<256x4xf32>
    %47 = vector.extract_strided_slice %33 {offsets = [0, 0], sizes = [256, 4], strides = [1, 1]} : vector<256x8xf32> to vector<256x4xf32>
    %48 = arith.addf %46, %47 : vector<256x4xf32>
    %49 = vector.extract_strided_slice %3 {offsets = [0, 12], sizes = [256, 4], strides = [1, 1]} : vector<256x36xf32> to vector<256x4xf32>
    %50 = vector.extract_strided_slice %30 {offsets = [0, 4], sizes = [256, 4], strides = [1, 1]} : vector<256x8xf32> to vector<256x4xf32>
    %51 = arith.addf %49, %50 : vector<256x4xf32>
    %52 = vector.extract_strided_slice %33 {offsets = [0, 4], sizes = [256, 4], strides = [1, 1]} : vector<256x8xf32> to vector<256x4xf32>
    %53 = arith.addf %51, %52 : vector<256x4xf32>
    %54 = arith.addf %53, %41 : vector<256x4xf32>
    %55 = tpu.concatenate %42, %45, %48, %54 in 1 : vector<256x4xf32>, vector<256x4xf32>, vector<256x4xf32>, vector<256x4xf32> -> vector<256x16xf32>
    %cst_12 = arith.constant dense<0.000000e+00> : vector<16xf32>
    %56 = vector.multi_reduction <add>, %55, %cst_12 [0] : vector<256x16xf32> to vector<16xf32>
    %57 = vector.shape_cast %56 : vector<16xf32> to vector<1x16xf32>
    %58 = arith.mulf %55, %55 : vector<256x16xf32>
    %cst_13 = arith.constant dense<0.000000e+00> : vector<16xf32>
    %59 = vector.multi_reduction <add>, %58, %cst_13 [0] : vector<256x16xf32> to vector<16xf32>
    %60 = vector.shape_cast %59 : vector<16xf32> to vector<1x16xf32>
    %61 = vector.extract_strided_slice %57 {offsets = [0, 0], sizes = [1, 4], strides = [1, 1]} : vector<1x16xf32> to vector<1x4xf32>
    %62 = vector.extract_strided_slice %57 {offsets = [0, 4], sizes = [1, 4], strides = [1, 1]} : vector<1x16xf32> to vector<1x4xf32>
    %63 = arith.addf %61, %62 : vector<1x4xf32>
    %64 = vector.extract_strided_slice %57 {offsets = [0, 8], sizes = [1, 4], strides = [1, 1]} : vector<1x16xf32> to vector<1x4xf32>
    %65 = arith.addf %63, %64 : vector<1x4xf32>
    %66 = vector.extract_strided_slice %57 {offsets = [0, 12], sizes = [1, 4], strides = [1, 1]} : vector<1x16xf32> to vector<1x4xf32>
    %67 = arith.addf %65, %66 : vector<1x4xf32>
    %68 = vector.extract_strided_slice %60 {offsets = [0, 0], sizes = [1, 4], strides = [1, 1]} : vector<1x16xf32> to vector<1x4xf32>
    %69 = vector.extract_strided_slice %60 {offsets = [0, 4], sizes = [1, 4], strides = [1, 1]} : vector<1x16xf32> to vector<1x4xf32>
    %70 = arith.addf %68, %69 : vector<1x4xf32>
    %71 = vector.extract_strided_slice %60 {offsets = [0, 8], sizes = [1, 4], strides = [1, 1]} : vector<1x16xf32> to vector<1x4xf32>
    %72 = arith.addf %70, %71 : vector<1x4xf32>
    %73 = vector.extract_strided_slice %60 {offsets = [0, 12], sizes = [1, 4], strides = [1, 1]} : vector<1x16xf32> to vector<1x4xf32>
    %74 = arith.addf %72, %73 : vector<1x4xf32>
    %cst_14 = arith.constant 1.024000e+03 : f32
    %75 = vector.broadcast %cst_14 : f32 to vector<1x4xf32>
    %76 = arith.divf %67, %75 : vector<1x4xf32>
    %cst_15 = arith.constant 1.024000e+03 : f32
    %77 = vector.broadcast %cst_15 : f32 to vector<1x4xf32>
    %78 = arith.divf %74, %77 : vector<1x4xf32>
    %79 = arith.mulf %76, %76 : vector<1x4xf32>
    %80 = arith.subf %78, %79 : vector<1x4xf32>
    %cst_16 = arith.constant 0.000000e+00 : f32
    %81 = vector.broadcast %cst_16 : f32 to vector<1x4xf32>
    %82 = arith.maximumf %80, %81 : vector<1x4xf32>
    %cst_17 = arith.constant 9.99999974E-6 : f32
    %83 = vector.broadcast %cst_17 : f32 to vector<1x4xf32>
    %84 = arith.addf %82, %83 : vector<1x4xf32>
    %85 = math.rsqrt %84 : vector<1x4xf32>
    %86 = tpu.concatenate %85, %85, %85, %85 in 1 : vector<1x4xf32>, vector<1x4xf32>, vector<1x4xf32>, vector<1x4xf32> -> vector<1x16xf32>
    %87 = arith.mulf %76, %85 : vector<1x4xf32>
    %88 = tpu.concatenate %87, %87, %87, %87 in 1 : vector<1x4xf32>, vector<1x4xf32>, vector<1x4xf32>, vector<1x4xf32> -> vector<1x16xf32>
    %89 = vector.broadcast %86 : vector<1x16xf32> to vector<256x16xf32>
    %90 = arith.mulf %55, %89 : vector<256x16xf32>
    %91 = vector.broadcast %88 : vector<1x16xf32> to vector<256x16xf32>
    %92 = arith.subf %90, %91 : vector<256x16xf32>
    %cst_18 = arith.constant 0.000000e+00 : f32
    %93 = vector.broadcast %cst_18 : f32 to vector<256x16xf32>
    %94 = arith.maximumf %92, %93 : vector<256x16xf32>
    %c0_19 = arith.constant 0 : index
    %c0_20 = arith.constant 0 : index
    %c0_21 = arith.constant 0 : index
    %95 = vector.load %arg3[%c0_19, %c0_20, %c0_21] : memref<1x256x16xf32, #tpu.memory_space<vmem>>, vector<1x256x16xf32>
    %96 = vector.shape_cast %95 : vector<1x256x16xf32> to vector<256x16xf32>
    %97 = vector.shape_cast %94 : vector<256x16xf32> to vector<1x256x16xf32>
    tpu.vector_store %arg3[%c0_19, %c0_20, %c0_21], %97 {strides = array<i32>} : memref<1x256x16xf32, #tpu.memory_space<vmem>>, vector<1x256x16xf32>,
    return
  }
  func.func @transform_0(%arg0: i32) -> (i32, i32, i32) {
    %c0_i32 = arith.constant 0 : i32
    %c0_i32_0 = arith.constant 0 : i32
    %c0_i32_1 = arith.constant 0 : i32
    return %arg0, %c0_i32, %c0_i32_0 : i32, i32, i32
  }
  func.func @transform_1(%arg0: i32) -> (i32, i32) {
    %c0_i32 = arith.constant 0 : i32
    %c0_i32_0 = arith.constant 0 : i32
    %c0_i32_1 = arith.constant 0 : i32
    return %c0_i32, %c0_i32_0 : i32, i32
  }
  func.func @transform_2(%arg0: i32) -> (i32, i32, i32) {
    %c0_i32 = arith.constant 0 : i32
    %c0_i32_0 = arith.constant 0 : i32
    %c0_i32_1 = arith.constant 0 : i32
    return %arg0, %c0_i32, %c0_i32_0 : i32, i32, i32
  }
}

</mosaic_0001>

<llo_original>
// kernel: tpu_custom_call.1
$region0: #{tpu_custom_call.1}
  #allocation0 [shape = 'u32[]', space=smem, size = 0x4, offset = 0x4, fixed_abs, tag = 'smem constant byte address 0x4 - core index']
  #allocation1 [shape = 'u32[72,128]{1,0:T(1,128)}', space=vmem, size = 0x9000, scoped, tag = 'internal scratch']
  %s0 = inlined_call_operand.vmem [shape: bf16[2,256,16], index: 0, kind: input, shape index: {}]
  %s1 = inlined_call_operand.vmem [shape: bf16[16,36], index: 1, kind: input, shape index: {}]
  %s2 = inlined_call_operand.vmem [shape: f32[2,256,16], index: 2, kind: output, shape index: {}]
  %s3 = sld [smem:[#allocation0]]
  $region41: #{tpu_custom_call.1} parent=0
    _
  %s5 = ssub.s32 1, %s3
  %s6 = scalar_select 0, %s5, %s3
  loop: start=0, step=1, limit=4
  $region2: #{tpu_custom_call.1} parent=0 // loop_pre_header
    _
  $region3: #{tpu_custom_call.1} parent=0 // loop_header
    %s8 = sphi 0, %s12
    %p9 = scmp.ge.s32.totalorder %s8, 4
    %s18 = sphi 0, %s20
    %s21 = sphi 0, %s18
    %s22 = sphi 0, %s21
    %s38 = sphi 0, %s22
    %s42 = sphi 0, %s42
    %s44 = sphi 0, %s42
    %s45 = sphi 0, %s44
    %s59 = sphi 0, %s45
    %s65 = sphi 0, %s67
    %s68 = sphi 0, %s65
    %s69 = sphi 0, %s68
    %s85 = sphi 0, %s69
  $region4: #{tpu_custom_call.1} parent=0 // loop_header_branch
    %11 = sbr.rel (%p9) target = $region8
  $region5: #{tpu_custom_call.1} parent=0 // loop_body
    %s13 = ssub.s32 %s8, 1
    %s14 = ssub.s32 %s8, 2
    %s15 = sadd.s32 %s8, 1
    %s16 = ssub.s32 %s8, %s15
    %p17 = scmp.eq.s32.totalorder %s16, 0
    %s19 = sadd.s32 %s18, 1
    %s20 = scalar_select %p17, %s18, %s19
    %p23 = pneg %p17
    %p24 = scmp.eq.s32.totalorder %s8, 1
    %p25 = por %p23, %p24
    %p26 = scmp.ne.s32.totalorder %s18, %s21
    %p27 = scmp.eq.s32.totalorder %s8, 0
    %p28 = por %p26, %p27
    %p29 = scmp.ne.s32.totalorder %s18, %s21
    %p30 = scmp.eq.s32.totalorder %s13, 1
    %p31 = por %p29, %p30
    %p32 = scmp.ne.s32.totalorder %s21, %s22
    %p33 = scmp.eq.s32.totalorder %s13, 0
    %p34 = por %p32, %p33
    %p35 = scmp.ne.s32.totalorder %s21, %s22
    %p36 = scmp.eq.s32.totalorder %s14, 1
    %p37 = por %p35, %p36
    %p39 = scmp.ne.s32.totalorder %s22, %s38
    %p40 = scmp.eq.s32.totalorder %s14, 0
    %p41 = por %p39, %p40
    %s43 = sadd.s32 %s42, 1
    %p46 = scmp.eq.s32.totalorder %s8, 1
    %p47 = scmp.ne.s32.totalorder %s42, %s44
    %p48 = scmp.eq.s32.totalorder %s8, 0
    %p49 = por %p47, %p48
    %p50 = scmp.ne.s32.totalorder %s42, %s44
    %p51 = scmp.eq.s32.totalorder %s13, 1
    %p52 = por %p50, %p51
    %p53 = scmp.ne.s32.totalorder %s44, %s45
    %p54 = scmp.eq.s32.totalorder %s13, 0
    %p55 = por %p53, %p54
    %p56 = scmp.ne.s32.totalorder %s44, %s45
    %p57 = scmp.eq.s32.totalorder %s14, 1
    %p58 = por %p56, %p57
    %p60 = scmp.ne.s32.totalorder %s45, %s59
    %p61 = scmp.eq.s32.totalorder %s14, 0
    %p62 = por %p60, %p61
    %s63 = ssub.s32 %s8, %s15
    %p64 = scmp.eq.s32.totalorder %s63, 0
    %s66 = sadd.s32 %s65, 1
    %s67 = scalar_select %p64, %s65, %s66
    %p70 = pneg %p64
    %p71 = scmp.eq.s32.totalorder %s8, 1
    %p72 = por %p70, %p71
    %p73 = scmp.ne.s32.totalorder %s65, %s68
    %p74 = scmp.eq.s32.totalorder %s8, 0
    %p75 = por %p73, %p74
    %p76 = scmp.ne.s32.totalorder %s65, %s68
    %p77 = scmp.eq.s32.totalorder %s13, 1
    %p78 = por %p76, %p77
    %p79 = scmp.ne.s32.totalorder %s68, %s69
    %p80 = scmp.eq.s32.totalorder %s13, 0
    %p81 = por %p79, %p80
    %p82 = scmp.ne.s32.totalorder %s68, %s69
    %p83 = scmp.eq.s32.totalorder %s14, 1
    %p84 = por %p82, %p83
    %p86 = scmp.ne.s32.totalorder %s69, %s85
    %p87 = scmp.eq.s32.totalorder %s14, 0
    %p88 = por %p86, %p87
    %p89 = scmp.le.s32.totalorder 1, %s8
    %p90 = scmp.lt.s32.totalorder %s8, 3
    %p91 = pnand %p89, %p90
    %p92 = pneg %p91
    // Predicated region
    $region9: #{tpu_custom_call.1} parent=5 // pred_check
      _
    $region10: #{tpu_custom_call.1} parent=5 // pred_check_branch
      %94 = sbr.rel (%p91) target = $region12
    $region11: #{tpu_custom_call.1} parent=5 // pred_region
      %s95 = ssub.s32 %s8, 1
      // Predicated region
      $region13: #{tpu_custom_call.1} parent=11 // pred_check
        %p96 = pneg %p55
      $region14: #{tpu_custom_call.1} parent=11 // pred_check_branch
        %98 = sbr.rel (%p96) target = $region16
      $region15: #{tpu_custom_call.1} parent=11 // pred_region
        _
      $region16: #{tpu_custom_call.1} parent=11 // pred_fallthru
        _
    $region12: #{tpu_custom_call.1} parent=5 // pred_fallthru
      _
    %p99 = scmp.lt.s32.totalorder %s8, 2
    // Predicated region
    $region17: #{tpu_custom_call.1} parent=5 // pred_check
      %p100 = pneg %p99
    $region18: #{tpu_custom_call.1} parent=5 // pred_check_branch
      %102 = sbr.rel (%p100) target = $region20
    $region19: #{tpu_custom_call.1} parent=5 // pred_region
      // Predicated region
      $region21: #{tpu_custom_call.1} parent=19 // pred_check
        %p103 = pneg %p28
      $region22: #{tpu_custom_call.1} parent=19 // pred_check_branch
        %105 = sbr.rel (%p103) target = $region24
      $region23: #{tpu_custom_call.1} parent=19 // pred_region
        %p106 = scmp.lt.s32.totalorder %s8, 1
        %s107 = scalar_select %p106, %s8, 1
        %s108 = smul.addr %s107, 32
        %s109 = smul.addr %s108, 4
        %s110 = scalar_lea.vmem %s0, %s109
      $region24: #{tpu_custom_call.1} parent=19 // pred_fallthru
        _
    $region20: #{tpu_custom_call.1} parent=5 // pred_fallthru
      _
    %p111 = scmp.le.s32.totalorder 1, %s8
    %p112 = scmp.lt.s32.totalorder %s8, 3
    %p113 = pnand %p111, %p112
    %p114 = pneg %p113
    // Predicated region
    $region25: #{tpu_custom_call.1} parent=5 // pred_check
      _
    $region26: #{tpu_custom_call.1} parent=5 // pred_check_branch
      %116 = sbr.rel (%p113) target = $region28
    $region27: #{tpu_custom_call.1} parent=5 // pred_region
      %s117 = ssub.s32 %s8, 1
      %p118 = scmp.lt.s32.totalorder %s13, 1
      %s119 = scalar_select %p118, %s13, 1
      %s120 = smul.addr %s119, 32
      %s121 = smul.addr %s120, 4
      %s122 = scalar_lea.vmem %s0, %s121
      %p123 = pneg %p34
      %p124 = pneg %p31
      %p125 = pneg %p55
      %p126 = pneg %p52
      %p127 = pneg %p81
      %p128 = pneg %p78
      %p129 = scmp.lt.s32.totalorder %s13, 1
      %s130 = scalar_select %p129, %s13, 1
      %s131 = smul.addr %s130, 32
      %s132 = smul.addr %s131, 8
      %s133 = scalar_lea.vmem %s2, %s132
      %p134 = scmp.lt.s32.totalorder %s13, 1
      %s135 = scalar_select %p134, %s13, 1
      %s136 = smul.addr %s135, 32
      %s137 = smul.addr %s136, 4
      %s138 = scalar_lea.vmem %s0, %s137
      %p139 = scmp.lt.s32.totalorder %s13, 1
      %s140 = scalar_select %p139, %s13, 1
      %s141 = smul.addr %s140, 32
      %s142 = smul.addr %s141, 8
      %s143 = scalar_lea.vmem %s2, %s142
      %v145 = vld [vmem:[%s138] sm:$0xf]
      %v146 = vld [vmem:[%s138 + $0x4] sm:$0xf]
      %v147 = vld [vmem:[%s138 + $0x8] sm:$0xf]
      %v148 = vld [vmem:[%s138 + $0xc] sm:$0xf]
      %v149 = vld [vmem:[%s138 + $0x10] sm:$0xf]
      %v150 = vld [vmem:[%s138 + $0x14] sm:$0xf]
      %v151 = vld [vmem:[%s138 + $0x18] sm:$0xf]
      %v152 = vld [vmem:[%s138 + $0x1c] sm:$0xf]
      %v153 = vld [vmem:[%s138 + $0x20] sm:$0xf]
      %v154 = vld [vmem:[%s138 + $0x24] sm:$0xf]
      %v155 = vld [vmem:[%s138 + $0x28] sm:$0xf]
      %v156 = vld [vmem:[%s138 + $0x2c] sm:$0xf]
      %v157 = vld [vmem:[%s138 + $0x30] sm:$0xf]
      %v158 = vld [vmem:[%s138 + $0x34] sm:$0xf]
      %v159 = vld [vmem:[%s138 + $0x38] sm:$0xf]
      %v160 = vld [vmem:[%s138 + $0x3c] sm:$0xf]
      %v161 = vld [vmem:[%s138 + $0x40] sm:$0xf]
      %v162 = vld [vmem:[%s138 + $0x44] sm:$0xf]
      %v163 = vld [vmem:[%s138 + $0x48] sm:$0xf]
      %v164 = vld [vmem:[%s138 + $0x4c] sm:$0xf]
      %v165 = vld [vmem:[%s138 + $0x50] sm:$0xf]
      %v166 = vld [vmem:[%s138 + $0x54] sm:$0xf]
      %v167 = vld [vmem:[%s138 + $0x58] sm:$0xf]
      %v168 = vld [vmem:[%s138 + $0x5c] sm:$0xf]
      %v169 = vld [vmem:[%s138 + $0x60] sm:$0xf]
      %v170 = vld [vmem:[%s138 + $0x64] sm:$0xf]
      %v171 = vld [vmem:[%s138 + $0x68] sm:$0xf]
      %v172 = vld [vmem:[%s138 + $0x6c] sm:$0xf]
      %v173 = vld [vmem:[%s138 + $0x70] sm:$0xf]
      %v174 = vld [vmem:[%s138 + $0x74] sm:$0xf]
      %v175 = vld [vmem:[%s138 + $0x78] sm:$0xf]
      %v176 = vld [vmem:[%s138 + $0x7c] sm:$0xf]
      %v177 = vld [vmem:[%s1] sm:$0xf]
      %v178 = vld [vmem:[%s1 + $0x4] sm:$0xf]
      %v211 = vunpack.c.l.b16 %v145
      %v212 = vunpack.c.l.b16 %v146
      %v213 = vunpack.c.l.b16 %v147
      %v214 = vunpack.c.l.b16 %v148
      %v215 = vunpack.c.l.b16 %v149
      %v216 = vunpack.c.l.b16 %v150
      %v217 = vunpack.c.l.b16 %v151
      %v218 = vunpack.c.l.b16 %v152
      %v219 = vunpack.c.l.b16 %v153
      %v220 = vunpack.c.l.b16 %v154
      %v221 = vunpack.c.l.b16 %v155
      %v222 = vunpack.c.l.b16 %v156
      %v223 = vunpack.c.l.b16 %v157
      %v224 = vunpack.c.l.b16 %v158
      %v225 = vunpack.c.l.b16 %v159
      %v226 = vunpack.c.l.b16 %v160
      %v227 = vunpack.c.l.b16 %v161
      %v228 = vunpack.c.l.b16 %v162
      %v229 = vunpack.c.l.b16 %v163
      %v230 = vunpack.c.l.b16 %v164
      %v231 = vunpack.c.l.b16 %v165
      %v232 = vunpack.c.l.b16 %v166
      %v233 = vunpack.c.l.b16 %v167
      %v234 = vunpack.c.l.b16 %v168
      %v235 = vunpack.c.l.b16 %v169
      %v236 = vunpack.c.l.b16 %v170
      %v237 = vunpack.c.l.b16 %v171
      %v238 = vunpack.c.l.b16 %v172
      %v239 = vunpack.c.l.b16 %v173
      %v240 = vunpack.c.l.b16 %v174
      %v241 = vunpack.c.l.b16 %v175
      %v242 = vunpack.c.l.b16 %v176
      %v243 = vpack.c.b16 %v212, %v211
      %v244 = vpack.c.b16 %v214, %v213
      %v245 = vpack.c.b16 %v216, %v215
      %v246 = vpack.c.b16 %v218, %v217
      %v247 = vpack.c.b16 %v220, %v219
      %v248 = vpack.c.b16 %v222, %v221
      %v249 = vpack.c.b16 %v224, %v223
      %v250 = vpack.c.b16 %v226, %v225
      %v251 = vpack.c.b16 %v228, %v227
      %v252 = vpack.c.b16 %v230, %v229
      %v253 = vpack.c.b16 %v232, %v231
      %v254 = vpack.c.b16 %v234, %v233
      %v255 = vpack.c.b16 %v236, %v235
      %v256 = vpack.c.b16 %v238, %v237
      %v257 = vpack.c.b16 %v240, %v239
      %v258 = vpack.c.b16 %v242, %v241
      %v261 = vunpack.c.l.b16 %v177
      %v262 = vunpack.c.l.b16 %v178
      %v263 = vpack.c.b16 %v262, %v261
      %vm265 = vcmask 130048
      %v267 = vsel %vm265, %v243, 0
      %v270 = vsel %vm265, %v244, 0
      %v273 = vsel %vm265, %v245, 0
      %v276 = vsel %vm265, %v246, 0
      %v279 = vsel %vm265, %v247, 0
      %v282 = vsel %vm265, %v248, 0
      %v285 = vsel %vm265, %v249, 0
      %v288 = vsel %vm265, %v250, 0
      %v291 = vsel %vm265, %v251, 0
      %v294 = vsel %vm265, %v252, 0
      %v297 = vsel %vm265, %v253, 0
      %v300 = vsel %vm265, %v254, 0
      %v303 = vsel %vm265, %v255, 0
      %v306 = vsel %vm265, %v256, 0
      %v309 = vsel %vm265, %v257, 0
      %v312 = vsel %vm265, %v258, 0
      %314 = vmatpush.bf16.msra.mxu0 0
      %315 = vmatpush.bf16.msra.mxu0 0
      %316 = vmatpush.bf16.msra.mxu0 0
      %317 = vmatpush.bf16.msra.mxu0 0
      %318 = vmatpush.bf16.msra.mxu0 0
      %319 = vmatpush.bf16.msra.mxu0 0
      %320 = vmatpush.bf16.msra.mxu0 0
      %321 = vmatpush.bf16.msra.mxu0 %v263
      %322 = vmatmul.bf16.gmra.mxu0 %v267
      %v323 = vpop.f32.mrf.mxu0
      %v324 = vadd.f32 0.0, %v323
      %v325 = vpop.f32.mrf.mxu0
      %v326 = vadd.f32 0.0, %v325
      %327 = vmatmul.bf16.gmra.mxu0 %v270
      %v328 = vpop.f32.mrf.mxu0
      %v329 = vadd.f32 0.0, %v328
      %v330 = vpop.f32.mrf.mxu0
      %v331 = vadd.f32 0.0, %v330
      %332 = vmatmul.bf16.gmra.mxu0 %v273
      %v333 = vpop.f32.mrf.mxu0
      %v334 = vadd.f32 0.0, %v333
      %v335 = vpop.f32.mrf.mxu0
      %v336 = vadd.f32 0.0, %v335
      %337 = vmatmul.bf16.gmra.mxu0 %v276
      %v338 = vpop.f32.mrf.mxu0
      %v339 = vadd.f32 0.0, %v338
      %v340 = vpop.f32.mrf.mxu0
      %v341 = vadd.f32 0.0, %v340
      %342 = vmatmul.bf16.gmra.mxu0 %v279
      %v343 = vpop.f32.mrf.mxu0
      %v344 = vadd.f32 0.0, %v343
      %v345 = vpop.f32.mrf.mxu0
      %v346 = vadd.f32 0.0, %v345
      %347 = vmatmul.bf16.gmra.mxu0 %v282
      %v348 = vpop.f32.mrf.mxu0
      %v349 = vadd.f32 0.0, %v348
      %v350 = vpop.f32.mrf.mxu0
      %v351 = vadd.f32 0.0, %v350
      %352 = vmatmul.bf16.gmra.mxu0 %v285
      %v353 = vpop.f32.mrf.mxu0
      %v354 = vadd.f32 0.0, %v353
      %v355 = vpop.f32.mrf.mxu0
      %v356 = vadd.f32 0.0, %v355
      %357 = vmatmul.bf16.gmra.mxu0 %v288
      %v358 = vpop.f32.mrf.mxu0
      %v359 = vadd.f32 0.0, %v358
      %v360 = vpop.f32.mrf.mxu0
      %v361 = vadd.f32 0.0, %v360
      %362 = vmatmul.bf16.gmra.mxu0 %v291
      %v363 = vpop.f32.mrf.mxu0
      %v364 = vadd.f32 0.0, %v363
      %v365 = vpop.f32.mrf.mxu0
      %v366 = vadd.f32 0.0, %v365
      %367 = vmatmul.bf16.gmra.mxu0 %v294
      %v368 = vpop.f32.mrf.mxu0
      %v369 = vadd.f32 0.0, %v368
      %v370 = vpop.f32.mrf.mxu0
      %v371 = vadd.f32 0.0, %v370
      %372 = vmatmul.bf16.gmra.mxu0 %v297
      %v373 = vpop.f32.mrf.mxu0
      %v374 = vadd.f32 0.0, %v373
      %v375 = vpop.f32.mrf.mxu0
      %v376 = vadd.f32 0.0, %v375
      %377 = vmatmul.bf16.gmra.mxu0 %v300
      %v378 = vpop.f32.mrf.mxu0
      %v379 = vadd.f32 0.0, %v378
      %v380 = vpop.f32.mrf.mxu0
      %v381 = vadd.f32 0.0, %v380
      %382 = vmatmul.bf16.gmra.mxu0 %v303
      %v383 = vpop.f32.mrf.mxu0
      %v384 = vadd.f32 0.0, %v383
      %v385 = vpop.f32.mrf.mxu0
      %v386 = vadd.f32 0.0, %v385
      %387 = vmatmul.bf16.gmra.mxu0 %v306
      %v388 = vpop.f32.mrf.mxu0
      %v389 = vadd.f32 0.0, %v388
      %v390 = vpop.f32.mrf.mxu0
      %v391 = vadd.f32 0.0, %v390
      %392 = vmatmul.bf16.gmra.mxu0 %v309
      %v393 = vpop.f32.mrf.mxu0
      %v394 = vadd.f32 0.0, %v393
      %v395 = vpop.f32.mrf.mxu0
      %v396 = vadd.f32 0.0, %v395
      %397 = vmatmul.bf16.gmra.mxu0 %v312
      %v398 = vpop.f32.mrf.mxu0
      %v399 = vadd.f32 0.0, %v398
      %v400 = vpop.f32.mrf.mxu0
      %v401 = vadd.f32 0.0, %v400
      %402 = vdwg.mxu0
      %v403 = vlaneseq
      %v404 = vshrl.u32 %v403, 7
      %v405 = vadd.s32 %v404, 8
      %v406 = vadd.s32 %v404, 16
      %v407 = vadd.s32 %v404, 24
      %v408 = vadd.s32 %v404, 32
      %v409 = vadd.s32 %v404, 40
      %v410 = vadd.s32 %v404, 48
      %v411 = vadd.s32 %v404, 56
      %v412 = vadd.s32 %v404, 64
      %v413 = vadd.s32 %v404, 72
      %v414 = vadd.s32 %v404, 80
      %v415 = vadd.s32 %v404, 88
      %v416 = vadd.s32 %v404, 96
      %v417 = vadd.s32 %v404, 104
      %v418 = vadd.s32 %v404, 112
      %v419 = vadd.s32 %v404, 120
      %v420 = vadd.s32 %v404, 128
      %v421 = vadd.s32 %v404, 136
      %v422 = vadd.s32 %v404, 144
      %v423 = vadd.s32 %v404, 152
      %v424 = vadd.s32 %v404, 160
      %v425 = vadd.s32 %v404, 168
      %v426 = vadd.s32 %v404, 176
      %v427 = vadd.s32 %v404, 184
      %v428 = vadd.s32 %v404, 192
      %v429 = vadd.s32 %v404, 200
      %v430 = vadd.s32 %v404, 208
      %v431 = vadd.s32 %v404, 216
      %v432 = vadd.s32 %v404, 224
      %v433 = vadd.s32 %v404, 232
      %v434 = vadd.s32 %v404, 240
      %v435 = vadd.s32 %v404, 248
      %vm436 = vcmp.lt.s32.totalorder %v404, 0
      %v437 = vsub.s32 0, %v404
      %v438 = vsel %vm436, %v437, %v404
      %v439 = vshrl.u32 %v438, 4
      %v440 = vand.u32 %v438, 15
      %v441 = vsub.s32 0, %v440
      %v442 = vsel %vm436, %v441, %v440
      %vm443 = vcmp.lt.s32.totalorder %v405, 0
      %v444 = vsub.s32 0, %v405
      %v445 = vsel %vm443, %v444, %v405
      %v446 = vshrl.u32 %v445, 4
      %v447 = vand.u32 %v445, 15
      %v448 = vsub.s32 0, %v447
      %v449 = vsel %vm443, %v448, %v447
      %vm450 = vcmp.lt.s32.totalorder %v406, 0
      %v451 = vsub.s32 0, %v406
      %v452 = vsel %vm450, %v451, %v406
      %v453 = vshrl.u32 %v452, 4
      %v454 = vand.u32 %v452, 15
      %v455 = vsub.s32 0, %v454
      %v456 = vsel %vm450, %v455, %v454
      %vm457 = vcmp.lt.s32.totalorder %v407, 0
      %v458 = vsub.s32 0, %v407
      %v459 = vsel %vm457, %v458, %v407
      %v460 = vshrl.u32 %v459, 4
      %v461 = vand.u32 %v459, 15
      %v462 = vsub.s32 0, %v461
      %v463 = vsel %vm457, %v462, %v461
      %vm464 = vcmp.lt.s32.totalorder %v408, 0
      %v465 = vsub.s32 0, %v408
      %v466 = vsel %vm464, %v465, %v408
      %v467 = vshrl.u32 %v466, 4
      %v468 = vand.u32 %v466, 15
      %v469 = vsub.s32 0, %v468
      %v470 = vsel %vm464, %v469, %v468
      %vm471 = vcmp.lt.s32.totalorder %v409, 0
      %v472 = vsub.s32 0, %v409
      %v473 = vsel %vm471, %v472, %v409
      %v474 = vshrl.u32 %v473, 4
      %v475 = vand.u32 %v473, 15
      %v476 = vsub.s32 0, %v475
      %v477 = vsel %vm471, %v476, %v475
      %vm478 = vcmp.lt.s32.totalorder %v410, 0
      %v479 = vsub.s32 0, %v410
      %v480 = vsel %vm478, %v479, %v410
      %v481 = vshrl.u32 %v480, 4
      %v482 = vand.u32 %v480, 15
      %v483 = vsub.s32 0, %v482
      %v484 = vsel %vm478, %v483, %v482
      %vm485 = vcmp.lt.s32.totalorder %v411, 0
      %v486 = vsub.s32 0, %v411
      %v487 = vsel %vm485, %v486, %v411
      %v488 = vshrl.u32 %v487, 4
      %v489 = vand.u32 %v487, 15
      %v490 = vsub.s32 0, %v489
      %v491 = vsel %vm485, %v490, %v489
      %vm492 = vcmp.lt.s32.totalorder %v412, 0
      %v493 = vsub.s32 0, %v412
      %v494 = vsel %vm492, %v493, %v412
      %v495 = vshrl.u32 %v494, 4
      %v496 = vand.u32 %v494, 15
      %v497 = vsub.s32 0, %v496
      %v498 = vsel %vm492, %v497, %v496
      %vm499 = vcmp.lt.s32.totalorder %v413, 0
      %v500 = vsub.s32 0, %v413
      %v501 = vsel %vm499, %v500, %v413
      %v502 = vshrl.u32 %v501, 4
      %v503 = vand.u32 %v501, 15
      %v504 = vsub.s32 0, %v503
      %v505 = vsel %vm499, %v504, %v503
      %vm506 = vcmp.lt.s32.totalorder %v414, 0
      %v507 = vsub.s32 0, %v414
      %v508 = vsel %vm506, %v507, %v414
      %v509 = vshrl.u32 %v508, 4
      %v510 = vand.u32 %v508, 15
      %v511 = vsub.s32 0, %v510
      %v512 = vsel %vm506, %v511, %v510
      %vm513 = vcmp.lt.s32.totalorder %v415, 0
      %v514 = vsub.s32 0, %v415
      %v515 = vsel %vm513, %v514, %v415
      %v516 = vshrl.u32 %v515, 4
      %v517 = vand.u32 %v515, 15
      %v518 = vsub.s32 0, %v517
      %v519 = vsel %vm513, %v518, %v517
      %vm520 = vcmp.lt.s32.totalorder %v416, 0
      %v521 = vsub.s32 0, %v416
      %v522 = vsel %vm520, %v521, %v416
      %v523 = vshrl.u32 %v522, 4
      %v524 = vand.u32 %v522, 15
      %v525 = vsub.s32 0, %v524
      %v526 = vsel %vm520, %v525, %v524
      %vm527 = vcmp.lt.s32.totalorder %v417, 0
      %v528 = vsub.s32 0, %v417
      %v529 = vsel %vm527, %v528, %v417
      %v530 = vshrl.u32 %v529, 4
      %v531 = vand.u32 %v529, 15
      %v532 = vsub.s32 0, %v531
      %v533 = vsel %vm527, %v532, %v531
      %vm534 = vcmp.lt.s32.totalorder %v418, 0
      %v535 = vsub.s32 0, %v418
      %v536 = vsel %vm534, %v535, %v418
      %v537 = vshrl.u32 %v536, 4
      %v538 = vand.u32 %v536, 15
      %v539 = vsub.s32 0, %v538
      %v540 = vsel %vm534, %v539, %v538
      %vm541 = vcmp.lt.s32.totalorder %v419, 0
      %v542 = vsub.s32 0, %v419
      %v543 = vsel %vm541, %v542, %v419
      %v544 = vshrl.u32 %v543, 4
      %v545 = vand.u32 %v543, 15
      %v546 = vsub.s32 0, %v545
      %v547 = vsel %vm541, %v546, %v545
      %vm548 = vcmp.lt.s32.totalorder %v420, 0
      %v549 = vsub.s32 0, %v420
      %v550 = vsel %vm548, %v549, %v420
      %v551 = vshrl.u32 %v550, 4
      %v552 = vand.u32 %v550, 15
      %v553 = vsub.s32 0, %v552
      %v554 = vsel %vm548, %v553, %v552
      %vm555 = vcmp.lt.s32.totalorder %v421, 0
      %v556 = vsub.s32 0, %v421
      %v557 = vsel %vm555, %v556, %v421
      %v558 = vshrl.u32 %v557, 4
      %v559 = vand.u32 %v557, 15
      %v560 = vsub.s32 0, %v559
      %v561 = vsel %vm555, %v560, %v559
      %vm562 = vcmp.lt.s32.totalorder %v422, 0
      %v563 = vsub.s32 0, %v422
      %v564 = vsel %vm562, %v563, %v422
      %v565 = vshrl.u32 %v564, 4
      %v566 = vand.u32 %v564, 15
      %v567 = vsub.s32 0, %v566
      %v568 = vsel %vm562, %v567, %v566
      %vm569 = vcmp.lt.s32.totalorder %v423, 0
      %v570 = vsub.s32 0, %v423
      %v571 = vsel %vm569, %v570, %v423
      %v572 = vshrl.u32 %v571, 4
      %v573 = vand.u32 %v571, 15
      %v574 = vsub.s32 0, %v573
      %v575 = vsel %vm569, %v574, %v573
      %vm576 = vcmp.lt.s32.totalorder %v424, 0
      %v577 = vsub.s32 0, %v424
      %v578 = vsel %vm576, %v577, %v424
      %v579 = vshrl.u32 %v578, 4
      %v580 = vand.u32 %v578, 15
      %v581 = vsub.s32 0, %v580
      %v582 = vsel %vm576, %v581, %v580
      %vm583 = vcmp.lt.s32.totalorder %v425, 0
      %v584 = vsub.s32 0, %v425
      %v585 = vsel %vm583, %v584, %v425
      %v586 = vshrl.u32 %v585, 4
      %v587 = vand.u32 %v585, 15
      %v588 = vsub.s32 0, %v587
      %v589 = vsel %vm583, %v588, %v587
      %vm590 = vcmp.lt.s32.totalorder %v426, 0
      %v591 = vsub.s32 0, %v426
      %v592 = vsel %vm590, %v591, %v426
      %v593 = vshrl.u32 %v592, 4
      %v594 = vand.u32 %v592, 15
      %v595 = vsub.s32 0, %v594
      %v596 = vsel %vm590, %v595, %v594
      %vm597 = vcmp.lt.s32.totalorder %v427, 0
      %v598 = vsub.s32 0, %v427
      %v599 = vsel %vm597, %v598, %v427
      %v600 = vshrl.u32 %v599, 4
      %v601 = vand.u32 %v599, 15
      %v602 = vsub.s32 0, %v601
      %v603 = vsel %vm597, %v602, %v601
      %vm604 = vcmp.lt.s32.totalorder %v428, 0
      %v605 = vsub.s32 0, %v428
      %v606 = vsel %vm604, %v605, %v428
      %v607 = vshrl.u32 %v606, 4
      %v608 = vand.u32 %v606, 15
      %v609 = vsub.s32 0, %v608
      %v610 = vsel %vm604, %v609, %v608
      %vm611 = vcmp.lt.s32.totalorder %v429, 0
      %v612 = vsub.s32 0, %v429
      %v613 = vsel %vm611, %v612, %v429
      %v614 = vshrl.u32 %v613, 4
      %v615 = vand.u32 %v613, 15
      %v616 = vsub.s32 0, %v615
      %v617 = vsel %vm611, %v616, %v615
      %vm618 = vcmp.lt.s32.totalorder %v430, 0
      %v619 = vsub.s32 0, %v430
      %v620 = vsel %vm618, %v619, %v430
      %v621 = vshrl.u32 %v620, 4
      %v622 = vand.u32 %v620, 15
      %v623 = vsub.s32 0, %v622
      %v624 = vsel %vm618, %v623, %v622
      %vm625 = vcmp.lt.s32.totalorder %v431, 0
      %v626 = vsub.s32 0, %v431
      %v627 = vsel %vm625, %v626, %v431
      %v628 = vshrl.u32 %v627, 4
      %v629 = vand.u32 %v627, 15
      %v630 = vsub.s32 0, %v629
      %v631 = vsel %vm625, %v630, %v629
      %vm632 = vcmp.lt.s32.totalorder %v432, 0
      %v633 = vsub.s32 0, %v432
      %v634 = vsel %vm632, %v633, %v432
      %v635 = vshrl.u32 %v634, 4
      %v636 = vand.u32 %v634, 15
      %v637 = vsub.s32 0, %v636
      %v638 = vsel %vm632, %v637, %v636
      %vm639 = vcmp.lt.s32.totalorder %v433, 0
      %v640 = vsub.s32 0, %v433
      %v641 = vsel %vm639, %v640, %v433
      %v642 = vshrl.u32 %v641, 4
      %v643 = vand.u32 %v641, 15
      %v644 = vsub.s32 0, %v643
      %v645 = vsel %vm639, %v644, %v643
      %vm646 = vcmp.lt.s32.totalorder %v434, 0
      %v647 = vsub.s32 0, %v434
      %v648 = vsel %vm646, %v647, %v434
      %v649 = vshrl.u32 %v648, 4
      %v650 = vand.u32 %v648, 15
      %v651 = vsub.s32 0, %v650
      %v652 = vsel %vm646, %v651, %v650
      %vm653 = vcmp.lt.s32.totalorder %v435, 0
      %v654 = vsub.s32 0, %v435
      %v655 = vsel %vm653, %v654, %v435
      %v656 = vshrl.u32 %v655, 4
      %v657 = vand.u32 %v655, 15
      %v658 = vsub.s32 0, %v657
      %v659 = vsel %vm653, %v658, %v657
      %vm660 = vcmp.ne.s32.totalorder %v442, 0
      %vm661 = vcmp.ne.s32.totalorder %v449, 0
      %vm662 = vcmp.ne.s32.totalorder %v456, 0
      %vm663 = vcmp.ne.s32.totalorder %v463, 0
      %vm664 = vcmp.ne.s32.totalorder %v470, 0
      %vm665 = vcmp.ne.s32.totalorder %v477, 0
      %vm666 = vcmp.ne.s32.totalorder %v484, 0
      %vm667 = vcmp.ne.s32.totalorder %v491, 0
      %vm668 = vcmp.ne.s32.totalorder %v498, 0
      %vm669 = vcmp.ne.s32.totalorder %v505, 0
      %vm670 = vcmp.ne.s32.totalorder %v512, 0
      %vm671 = vcmp.ne.s32.totalorder %v519, 0
      %vm672 = vcmp.ne.s32.totalorder %v526, 0
      %vm673 = vcmp.ne.s32.totalorder %v533, 0
      %vm674 = vcmp.ne.s32.totalorder %v540, 0
      %vm675 = vcmp.ne.s32.totalorder %v547, 0
      %vm676 = vcmp.ne.s32.totalorder %v554, 0
      %vm677 = vcmp.ne.s32.totalorder %v561, 0
      %vm678 = vcmp.ne.s32.totalorder %v568, 0
      %vm679 = vcmp.ne.s32.totalorder %v575, 0
      %vm680 = vcmp.ne.s32.totalorder %v582, 0
      %vm681 = vcmp.ne.s32.totalorder %v589, 0
      %vm682 = vcmp.ne.s32.totalorder %v596, 0
      %vm683 = vcmp.ne.s32.totalorder %v603, 0
      %vm684 = vcmp.ne.s32.totalorder %v610, 0
      %vm685 = vcmp.ne.s32.totalorder %v617, 0
      %vm686 = vcmp.ne.s32.totalorder %v624, 0
      %vm687 = vcmp.ne.s32.totalorder %v631, 0
      %vm688 = vcmp.ne.s32.totalorder %v638, 0
      %vm689 = vcmp.ne.s32.totalorder %v645, 0
      %vm690 = vcmp.ne.s32.totalorder %v652, 0
      %vm691 = vcmp.ne.s32.totalorder %v659, 0
      %vm692 = vcmp.lt.s32.totalorder %v442, 0
      %vm693 = vcmp.lt.s32.totalorder %v449, 0
      %vm694 = vcmp.lt.s32.totalorder %v456, 0
      %vm695 = vcmp.lt.s32.totalorder %v463, 0
      %vm696 = vcmp.lt.s32.totalorder %v470, 0
      %vm697 = vcmp.lt.s32.totalorder %v477, 0
      %vm698 = vcmp.lt.s32.totalorder %v484, 0
      %vm699 = vcmp.lt.s32.totalorder %v491, 0
      %vm700 = vcmp.lt.s32.totalorder %v498, 0
      %vm701 = vcmp.lt.s32.totalorder %v505, 0
      %vm702 = vcmp.lt.s32.totalorder %v512, 0
      %vm703 = vcmp.lt.s32.totalorder %v519, 0
      %vm704 = vcmp.lt.s32.totalorder %v526, 0
      %vm705 = vcmp.lt.s32.totalorder %v533, 0
      %vm706 = vcmp.lt.s32.totalorder %v540, 0
      %vm707 = vcmp.lt.s32.totalorder %v547, 0
      %vm708 = vcmp.lt.s32.totalorder %v554, 0
      %vm709 = vcmp.lt.s32.totalorder %v561, 0
      %vm710 = vcmp.lt.s32.totalorder %v568, 0
      %vm711 = vcmp.lt.s32.totalorder %v575, 0
      %vm712 = vcmp.lt.s32.totalorder %v582, 0
      %vm713 = vcmp.lt.s32.totalorder %v589, 0
      %vm714 = vcmp.lt.s32.totalorder %v596, 0
      %vm715 = vcmp.lt.s32.totalorder %v603, 0
      %vm716 = vcmp.lt.s32.totalorder %v610, 0
      %vm717 = vcmp.lt.s32.totalorder %v617, 0
      %vm718 = vcmp.lt.s32.totalorder %v624, 0
      %vm719 = vcmp.lt.s32.totalorder %v631, 0
      %vm720 = vcmp.lt.s32.totalorder %v638, 0
      %vm721 = vcmp.lt.s32.totalorder %v645, 0
      %vm722 = vcmp.lt.s32.totalorder %v652, 0
      %vm723 = vcmp.lt.s32.totalorder %v659, 0
      %vm724 = vmand %vm692, %vm660
      %vm725 = vmand %vm693, %vm661
      %vm726 = vmand %vm694, %vm662
      %vm727 = vmand %vm695, %vm663
      %vm728 = vmand %vm696, %vm664
      %vm729 = vmand %vm697, %vm665
      %vm730 = vmand %vm698, %vm666
      %vm731 = vmand %vm699, %vm667
      %vm732 = vmand %vm700, %vm668
      %vm733 = vmand %vm701, %vm669
      %vm734 = vmand %vm702, %vm670
      %vm735 = vmand %vm703, %vm671
      %vm736 = vmand %vm704, %vm672
      %vm737 = vmand %vm705, %vm673
      %vm738 = vmand %vm706, %vm674
      %vm739 = vmand %vm707, %vm675
      %vm740 = vmand %vm708, %vm676
      %vm741 = vmand %vm709, %vm677
      %vm742 = vmand %vm710, %vm678
      %vm743 = vmand %vm711, %vm679
      %vm744 = vmand %vm712, %vm680
      %vm745 = vmand %vm713, %vm681
      %vm746 = vmand %vm714, %vm682
      %vm747 = vmand %vm715, %vm683
      %vm748 = vmand %vm716, %vm684
      %vm749 = vmand %vm717, %vm685
      %vm750 = vmand %vm718, %vm686
      %vm751 = vmand %vm719, %vm687
      %vm752 = vmand %vm720, %vm688
      %vm753 = vmand %vm721, %vm689
      %vm754 = vmand %vm722, %vm690
      %vm755 = vmand %vm723, %vm691
      %v756 = vadd.s32 %v442, 16
      %v757 = vadd.s32 %v449, 16
      %v758 = vadd.s32 %v456, 16
      %v759 = vadd.s32 %v463, 16
      %v760 = vadd.s32 %v470, 16
      %v761 = vadd.s32 %v477, 16
      %v762 = vadd.s32 %v484, 16
      %v763 = vadd.s32 %v491, 16
      %v764 = vadd.s32 %v498, 16
      %v765 = vadd.s32 %v505, 16
      %v766 = vadd.s32 %v512, 16
      %v767 = vadd.s32 %v519, 16
      %v768 = vadd.s32 %v526, 16
      %v769 = vadd.s32 %v533, 16
      %v770 = vadd.s32 %v540, 16
      %v771 = vadd.s32 %v547, 16
      %v772 = vadd.s32 %v554, 16
      %v773 = vadd.s32 %v561, 16
      %v774 = vadd.s32 %v568, 16
      %v775 = vadd.s32 %v575, 16
      %v776 = vadd.s32 %v582, 16
      %v777 = vadd.s32 %v589, 16
      %v778 = vadd.s32 %v596, 16
      %v779 = vadd.s32 %v603, 16
      %v780 = vadd.s32 %v610, 16
      %v781 = vadd.s32 %v617, 16
      %v782 = vadd.s32 %v624, 16
      %v783 = vadd.s32 %v631, 16
      %v784 = vadd.s32 %v638, 16
      %v785 = vadd.s32 %v645, 16
      %v786 = vadd.s32 %v652, 16
      %v787 = vadd.s32 %v659, 16
      %v788 = vsel %vm724, %v756, %v442
      %v789 = vsel %vm725, %v757, %v449
      %v790 = vsel %vm726, %v758, %v456
      %v791 = vsel %vm727, %v759, %v463
      %v792 = vsel %vm728, %v760, %v470
      %v793 = vsel %vm729, %v761, %v477
      %v794 = vsel %vm730, %v762, %v484
      %v795 = vsel %vm731, %v763, %v491
      %v796 = vsel %vm732, %v764, %v498
      %v797 = vsel %vm733, %v765, %v505
      %v798 = vsel %vm734, %v766, %v512
      %v799 = vsel %vm735, %v767, %v519
      %v800 = vsel %vm736, %v768, %v526
      %v801 = vsel %vm737, %v769, %v533
      %v802 = vsel %vm738, %v770, %v540
      %v803 = vsel %vm739, %v771, %v547
      %v804 = vsel %vm740, %v772, %v554
      %v805 = vsel %vm741, %v773, %v561
      %v806 = vsel %vm742, %v774, %v568
      %v807 = vsel %vm743, %v775, %v575
      %v808 = vsel %vm744, %v776, %v582
      %v809 = vsel %vm745, %v777, %v589
      %v810 = vsel %vm746, %v778, %v596
      %v811 = vsel %vm747, %v779, %v603
      %v812 = vsel %vm748, %v780, %v610
      %v813 = vsel %vm749, %v781, %v617
      %v814 = vsel %vm750, %v782, %v624
      %v815 = vsel %vm751, %v783, %v631
      %v816 = vsel %vm752, %v784, %v638
      %v817 = vsel %vm753, %v785, %v645
      %v818 = vsel %vm754, %v786, %v652
      %v819 = vsel %vm755, %v787, %v659
      %vm820 = vcmp.ne.s32.totalorder %v788, 15
      %vm821 = vcmp.ne.s32.totalorder %v789, 15
      %vm822 = vcmp.ne.s32.totalorder %v790, 15
      %vm823 = vcmp.ne.s32.totalorder %v791, 15
      %vm824 = vcmp.ne.s32.totalorder %v792, 15
      %vm825 = vcmp.ne.s32.totalorder %v793, 15
      %vm826 = vcmp.ne.s32.totalorder %v794, 15
      %vm827 = vcmp.ne.s32.totalorder %v795, 15
      %vm828 = vcmp.ne.s32.totalorder %v796, 15
      %vm829 = vcmp.ne.s32.totalorder %v797, 15
      %vm830 = vcmp.ne.s32.totalorder %v798, 15
      %vm831 = vcmp.ne.s32.totalorder %v799, 15
      %vm832 = vcmp.ne.s32.totalorder %v800, 15
      %vm833 = vcmp.ne.s32.totalorder %v801, 15
      %vm834 = vcmp.ne.s32.totalorder %v802, 15
      %vm835 = vcmp.ne.s32.totalorder %v803, 15
      %vm836 = vcmp.ne.s32.totalorder %v804, 15
      %vm837 = vcmp.ne.s32.totalorder %v805, 15
      %vm838 = vcmp.ne.s32.totalorder %v806, 15
      %vm839 = vcmp.ne.s32.totalorder %v807, 15
      %vm840 = vcmp.ne.s32.totalorder %v808, 15
      %vm841 = vcmp.ne.s32.totalorder %v809, 15
      %vm842 = vcmp.ne.s32.totalorder %v810, 15
      %vm843 = vcmp.ne.s32.totalorder %v811, 15
      %vm844 = vcmp.ne.s32.totalorder %v812, 15
      %vm845 = vcmp.ne.s32.totalorder %v813, 15
      %vm846 = vcmp.ne.s32.totalorder %v814, 15
      %vm847 = vcmp.ne.s32.totalorder %v815, 15
      %vm848 = vcmp.ne.s32.totalorder %v816, 15
      %vm849 = vcmp.ne.s32.totalorder %v817, 15
      %vm850 = vcmp.ne.s32.totalorder %v818, 15
      %vm851 = vcmp.ne.s32.totalorder %v819, 15
      %vm884 = vcmask 1046528
      %v885 = vrot.slane %v324, 1
      %v886 = vrot.slane %v326, 1
      %v887 = vsel %vm884, %v885, %v886
      %v888 = vrot.slane %v329, 1
      %v889 = vsel %vm884, %v886, %v888
      %v890 = vrot.slane %v331, 1
      %v891 = vsel %vm884, %v888, %v890
      %v892 = vrot.slane %v334, 1
      %v893 = vsel %vm884, %v890, %v892
      %v894 = vrot.slane %v336, 1
      %v895 = vsel %vm884, %v892, %v894
      %v896 = vrot.slane %v339, 1
      %v897 = vsel %vm884, %v894, %v896
      %v898 = vrot.slane %v341, 1
      %v899 = vsel %vm884, %v896, %v898
      %v900 = vrot.slane %v344, 1
      %v901 = vsel %vm884, %v898, %v900
      %v902 = vrot.slane %v346, 1
      %v903 = vsel %vm884, %v900, %v902
      %v904 = vrot.slane %v349, 1
      %v905 = vsel %vm884, %v902, %v904
      %v906 = vrot.slane %v351, 1
      %v907 = vsel %vm884, %v904, %v906
      %v908 = vrot.slane %v354, 1
      %v909 = vsel %vm884, %v906, %v908
      %v910 = vrot.slane %v356, 1
      %v911 = vsel %vm884, %v908, %v910
      %v912 = vrot.slane %v359, 1
      %v913 = vsel %vm884, %v910, %v912
      %v914 = vrot.slane %v361, 1
      %v915 = vsel %vm884, %v912, %v914
      %v916 = vrot.slane %v364, 1
      %v917 = vsel %vm884, %v914, %v916
      %v918 = vrot.slane %v366, 1
      %v919 = vsel %vm884, %v916, %v918
      %v920 = vrot.slane %v369, 1
      %v921 = vsel %vm884, %v918, %v920
      %v922 = vrot.slane %v371, 1
      %v923 = vsel %vm884, %v920, %v922
      %v924 = vrot.slane %v374, 1
      %v925 = vsel %vm884, %v922, %v924
      %v926 = vrot.slane %v376, 1
      %v927 = vsel %vm884, %v924, %v926
      %v928 = vrot.slane %v379, 1
      %v929 = vsel %vm884, %v926, %v928
      %v930 = vrot.slane %v381, 1
      %v931 = vsel %vm884, %v928, %v930
      %v932 = vrot.slane %v384, 1
      %v933 = vsel %vm884, %v930, %v932
      %v934 = vrot.slane %v386, 1
      %v935 = vsel %vm884, %v932, %v934
      %v936 = vrot.slane %v389, 1
      %v937 = vsel %vm884, %v934, %v936
      %v938 = vrot.slane %v391, 1
      %v939 = vsel %vm884, %v936, %v938
      %v940 = vrot.slane %v394, 1
      %v941 = vsel %vm884, %v938, %v940
      %v942 = vrot.slane %v396, 1
      %v943 = vsel %vm884, %v940, %v942
      %v944 = vrot.slane %v399, 1
      %v945 = vsel %vm884, %v942, %v944
      %v946 = vrot.slane %v401, 1
      %v947 = vsel %vm884, %v944, %v946
      %v980 = vsel %vm884, %v946, 0.0
      %v981 = vsel %vm820, 1, 0
      %v982 = vsel %vm821, 1, 0
      %v983 = vsel %vm822, 1, 0
      %v984 = vsel %vm823, 1, 0
      %v985 = vsel %vm824, 1, 0
      %v986 = vsel %vm825, 1, 0
      %v987 = vsel %vm826, 1, 0
      %v988 = vsel %vm827, 1, 0
      %v989 = vsel %vm828, 1, 0
      %v990 = vsel %vm829, 1, 0
      %v991 = vsel %vm830, 1, 0
      %v992 = vsel %vm831, 1, 0
      %v993 = vsel %vm832, 1, 0
      %v994 = vsel %vm833, 1, 0
      %v995 = vsel %vm834, 1, 0
      %v996 = vsel %vm835, 1, 0
      %v997 = vsel %vm836, 1, 0
      %v998 = vsel %vm837, 1, 0
      %v999 = vsel %vm838, 1, 0
      %v1000 = vsel %vm839, 1, 0
      %v1001 = vsel %vm840, 1, 0
      %v1002 = vsel %vm841, 1, 0
      %v1003 = vsel %vm842, 1, 0
      %v1004 = vsel %vm843, 1, 0
      %v1005 = vsel %vm844, 1, 0
      %v1006 = vsel %vm845, 1, 0
      %v1007 = vsel %vm846, 1, 0
      %v1008 = vsel %vm847, 1, 0
      %v1009 = vsel %vm848, 1, 0
      %v1010 = vsel %vm849, 1, 0
      %v1011 = vsel %vm850, 1, 0
      %v1012 = vsel %vm851, 1, 0
      %vm1013 = vcmp.eq.s32.totalorder %v981, 1
      %vm1014 = vcmp.eq.s32.totalorder %v982, 1
      %vm1015 = vcmp.eq.s32.totalorder %v983, 1
      %vm1016 = vcmp.eq.s32.totalorder %v984, 1
      %vm1017 = vcmp.eq.s32.totalorder %v985, 1
      %vm1018 = vcmp.eq.s32.totalorder %v986, 1
      %vm1019 = vcmp.eq.s32.totalorder %v987, 1
      %vm1020 = vcmp.eq.s32.totalorder %v988, 1
      %vm1021 = vcmp.eq.s32.totalorder %v989, 1
      %vm1022 = vcmp.eq.s32.totalorder %v990, 1
      %vm1023 = vcmp.eq.s32.totalorder %v991, 1
      %vm1024 = vcmp.eq.s32.totalorder %v992, 1
      %vm1025 = vcmp.eq.s32.totalorder %v993, 1
      %vm1026 = vcmp.eq.s32.totalorder %v994, 1
      %vm1027 = vcmp.eq.s32.totalorder %v995, 1
      %vm1028 = vcmp.eq.s32.totalorder %v996, 1
      %vm1029 = vcmp.eq.s32.totalorder %v997, 1
      %vm1030 = vcmp.eq.s32.totalorder %v998, 1
      %vm1031 = vcmp.eq.s32.totalorder %v999, 1
      %vm1032 = vcmp.eq.s32.totalorder %v1000, 1
      %vm1033 = vcmp.eq.s32.totalorder %v1001, 1
      %vm1034 = vcmp.eq.s32.totalorder %v1002, 1
      %vm1035 = vcmp.eq.s32.totalorder %v1003, 1
      %vm1036 = vcmp.eq.s32.totalorder %v1004, 1
      %vm1037 = vcmp.eq.s32.totalorder %v1005, 1
      %vm1038 = vcmp.eq.s32.totalorder %v1006, 1
      %vm1039 = vcmp.eq.s32.totalorder %v1007, 1
      %vm1040 = vcmp.eq.s32.totalorder %v1008, 1
      %vm1041 = vcmp.eq.s32.totalorder %v1009, 1
      %vm1042 = vcmp.eq.s32.totalorder %v1010, 1
      %vm1043 = vcmp.eq.s32.totalorder %v1011, 1
      %vm1044 = vcmp.eq.s32.totalorder %v1012, 1
      %v1045 = vsel %vm1013, %v887, 0.0
      %v1046 = vsel %vm1014, %v889, 0.0
      %v1047 = vsel %vm1015, %v891, 0.0
      %v1048 = vsel %vm1016, %v893, 0.0
      %v1049 = vsel %vm1017, %v895, 0.0
      %v1050 = vsel %vm1018, %v897, 0.0
      %v1051 = vsel %vm1019, %v899, 0.0
      %v1052 = vsel %vm1020, %v901, 0.0
      %v1053 = vsel %vm1021, %v903, 0.0
      %v1054 = vsel %vm1022, %v905, 0.0
      %v1055 = vsel %vm1023, %v907, 0.0
      %v1056 = vsel %vm1024, %v909, 0.0
      %v1057 = vsel %vm1025, %v911, 0.0
      %v1058 = vsel %vm1026, %v913, 0.0
      %v1059 = vsel %vm1027, %v915, 0.0
      %v1060 = vsel %vm1028, %v917, 0.0
      %v1061 = vsel %vm1029, %v919, 0.0
      %v1062 = vsel %vm1030, %v921, 0.0
      %v1063 = vsel %vm1031, %v923, 0.0
      %v1064 = vsel %vm1032, %v925, 0.0
      %v1065 = vsel %vm1033, %v927, 0.0
      %v1066 = vsel %vm1034, %v929, 0.0
      %v1067 = vsel %vm1035, %v931, 0.0
      %v1068 = vsel %vm1036, %v933, 0.0
      %v1069 = vsel %vm1037, %v935, 0.0
      %v1070 = vsel %vm1038, %v937, 0.0
      %v1071 = vsel %vm1039, %v939, 0.0
      %v1072 = vsel %vm1040, %v941, 0.0
      %v1073 = vsel %vm1041, %v943, 0.0
      %v1074 = vsel %vm1042, %v945, 0.0
      %v1075 = vsel %vm1043, %v947, 0.0
      %v1076 = vsel %vm1044, %v980, 0.0
      %v1077 = vsel %vm1013, %v891, 0.0
      %v1078 = vsel %vm1014, %v893, 0.0
      %v1079 = vsel %vm1015, %v895, 0.0
      %v1080 = vsel %vm1016, %v897, 0.0
      %v1081 = vsel %vm1017, %v899, 0.0
      %v1082 = vsel %vm1018, %v901, 0.0
      %v1083 = vsel %vm1019, %v903, 0.0
      %v1084 = vsel %vm1020, %v905, 0.0
      %v1085 = vsel %vm1021, %v907, 0.0
      %v1086 = vsel %vm1022, %v909, 0.0
      %v1087 = vsel %vm1023, %v911, 0.0
      %v1088 = vsel %vm1024, %v913, 0.0
      %v1089 = vsel %vm1025, %v915, 0.0
      %v1090 = vsel %vm1026, %v917, 0.0
      %v1091 = vsel %vm1027, %v919, 0.0
      %v1092 = vsel %vm1028, %v921, 0.0
      %v1093 = vsel %vm1029, %v923, 0.0
      %v1094 = vsel %vm1030, %v925, 0.0
      %v1095 = vsel %vm1031, %v927, 0.0
      %v1096 = vsel %vm1032, %v929, 0.0
      %v1097 = vsel %vm1033, %v931, 0.0
      %v1098 = vsel %vm1034, %v933, 0.0
      %v1099 = vsel %vm1035, %v935, 0.0
      %v1100 = vsel %vm1036, %v937, 0.0
      %v1101 = vsel %vm1037, %v939, 0.0
      %v1102 = vsel %vm1038, %v941, 0.0
      %v1103 = vsel %vm1039, %v943, 0.0
      %v1104 = vsel %vm1040, %v945, 0.0
      %v1105 = vsel %vm1041, %v947, 0.0
      %v1106 = vsel %vm1042, %v980, 0.0
      %1139 = vrot.lane.b32.xlu0 %v1045, 116
      %v1140 = vpop.permute.xlu0 %1139
      %1141 = vrot.lane.b32.xlu0 %v1046, 116
      %v1142 = vpop.permute.xlu0 %1141
      %1143 = vrot.lane.b32.xlu0 %v1047, 116
      %v1144 = vpop.permute.xlu0 %1143
      %1145 = vrot.lane.b32.xlu0 %v1048, 116
      %v1146 = vpop.permute.xlu0 %1145
      %1147 = vrot.lane.b32.xlu0 %v1049, 116
      %v1148 = vpop.permute.xlu0 %1147
      %1149 = vrot.lane.b32.xlu0 %v1050, 116
      %v1150 = vpop.permute.xlu0 %1149
      %1151 = vrot.lane.b32.xlu0 %v1051, 116
      %v1152 = vpop.permute.xlu0 %1151
      %1153 = vrot.lane.b32.xlu0 %v1052, 116
      %v1154 = vpop.permute.xlu0 %1153
      %1155 = vrot.lane.b32.xlu0 %v1053, 116
      %v1156 = vpop.permute.xlu0 %1155
      %1157 = vrot.lane.b32.xlu0 %v1054, 116
      %v1158 = vpop.permute.xlu0 %1157
      %1159 = vrot.lane.b32.xlu0 %v1055, 116
      %v1160 = vpop.permute.xlu0 %1159
      %1161 = vrot.lane.b32.xlu0 %v1056, 116
      %v1162 = vpop.permute.xlu0 %1161
      %1163 = vrot.lane.b32.xlu0 %v1057, 116
      %v1164 = vpop.permute.xlu0 %1163
      %1165 = vrot.lane.b32.xlu0 %v1058, 116
      %v1166 = vpop.permute.xlu0 %1165
      %1167 = vrot.lane.b32.xlu0 %v1059, 116
      %v1168 = vpop.permute.xlu0 %1167
      %1169 = vrot.lane.b32.xlu0 %v1060, 116
      %v1170 = vpop.permute.xlu0 %1169
      %1171 = vrot.lane.b32.xlu0 %v1061, 116
      %v1172 = vpop.permute.xlu0 %1171
      %1173 = vrot.lane.b32.xlu0 %v1062, 116
      %v1174 = vpop.permute.xlu0 %1173
      %1175 = vrot.lane.b32.xlu0 %v1063, 116
      %v1176 = vpop.permute.xlu0 %1175
      %1177 = vrot.lane.b32.xlu0 %v1064, 116
      %v1178 = vpop.permute.xlu0 %1177
      %1179 = vrot.lane.b32.xlu0 %v1065, 116
      %v1180 = vpop.permute.xlu0 %1179
      %1181 = vrot.lane.b32.xlu0 %v1066, 116
      %v1182 = vpop.permute.xlu0 %1181
      %1183 = vrot.lane.b32.xlu0 %v1067, 116
      %v1184 = vpop.permute.xlu0 %1183
      %1185 = vrot.lane.b32.xlu0 %v1068, 116
      %v1186 = vpop.permute.xlu0 %1185
      %1187 = vrot.lane.b32.xlu0 %v1069, 116
      %v1188 = vpop.permute.xlu0 %1187
      %1189 = vrot.lane.b32.xlu0 %v1070, 116
      %v1190 = vpop.permute.xlu0 %1189
      %1191 = vrot.lane.b32.xlu0 %v1071, 116
      %v1192 = vpop.permute.xlu0 %1191
      %1193 = vrot.lane.b32.xlu0 %v1072, 116
      %v1194 = vpop.permute.xlu0 %1193
      %1195 = vrot.lane.b32.xlu0 %v1073, 116
      %v1196 = vpop.permute.xlu0 %1195
      %1197 = vrot.lane.b32.xlu0 %v1074, 116
      %v1198 = vpop.permute.xlu0 %1197
      %1199 = vrot.lane.b32.xlu0 %v1075, 116
      %v1200 = vpop.permute.xlu0 %1199
      %1201 = vrot.lane.b32.xlu0 %v1076, 116
      %v1202 = vpop.permute.xlu0 %1201
      %v1235 = vadd.f32 %v324, %v1140
      %v1236 = vadd.f32 %v326, %v1142
      %v1237 = vadd.f32 %v329, %v1144
      %v1238 = vadd.f32 %v331, %v1146
      %v1239 = vadd.f32 %v334, %v1148
      %v1240 = vadd.f32 %v336, %v1150
      %v1241 = vadd.f32 %v339, %v1152
      %v1242 = vadd.f32 %v341, %v1154
      %v1243 = vadd.f32 %v344, %v1156
      %v1244 = vadd.f32 %v346, %v1158
      %v1245 = vadd.f32 %v349, %v1160
      %v1246 = vadd.f32 %v351, %v1162
      %v1247 = vadd.f32 %v354, %v1164
      %v1248 = vadd.f32 %v356, %v1166
      %v1249 = vadd.f32 %v359, %v1168
      %v1250 = vadd.f32 %v361, %v1170
      %v1251 = vadd.f32 %v364, %v1172
      %v1252 = vadd.f32 %v366, %v1174
      %v1253 = vadd.f32 %v369, %v1176
      %v1254 = vadd.f32 %v371, %v1178
      %v1255 = vadd.f32 %v374, %v1180
      %v1256 = vadd.f32 %v376, %v1182
      %v1257 = vadd.f32 %v379, %v1184
      %v1258 = vadd.f32 %v381, %v1186
      %v1259 = vadd.f32 %v384, %v1188
      %v1260 = vadd.f32 %v386, %v1190
      %v1261 = vadd.f32 %v389, %v1192
      %v1262 = vadd.f32 %v391, %v1194
      %v1263 = vadd.f32 %v394, %v1196
      %v1264 = vadd.f32 %v396, %v1198
      %v1265 = vadd.f32 %v399, %v1200
      %v1266 = vadd.f32 %v401, %v1202
      %1268 = vrot.lane.b32.xlu0 %v329, 112
      %v1269 = vpop.permute.xlu0 %1268
      %1270 = vrot.lane.b32.xlu0 %v331, 112
      %v1271 = vpop.permute.xlu0 %1270
      %1272 = vrot.lane.b32.xlu0 %v334, 112
      %v1273 = vpop.permute.xlu0 %1272
      %1274 = vrot.lane.b32.xlu0 %v336, 112
      %v1275 = vpop.permute.xlu0 %1274
      %1276 = vrot.lane.b32.xlu0 %v339, 112
      %v1277 = vpop.permute.xlu0 %1276
      %1278 = vrot.lane.b32.xlu0 %v341, 112
      %v1279 = vpop.permute.xlu0 %1278
      %1280 = vrot.lane.b32.xlu0 %v344, 112
      %v1281 = vpop.permute.xlu0 %1280
      %1282 = vrot.lane.b32.xlu0 %v346, 112
      %v1283 = vpop.permute.xlu0 %1282
      %1284 = vrot.lane.b32.xlu0 %v349, 112
      %v1285 = vpop.permute.xlu0 %1284
      %1286 = vrot.lane.b32.xlu0 %v351, 112
      %v1287 = vpop.permute.xlu0 %1286
      %1288 = vrot.lane.b32.xlu0 %v354, 112
      %v1289 = vpop.permute.xlu0 %1288
      %1290 = vrot.lane.b32.xlu0 %v356, 112
      %v1291 = vpop.permute.xlu0 %1290
      %1292 = vrot.lane.b32.xlu0 %v359, 112
      %v1293 = vpop.permute.xlu0 %1292
      %1294 = vrot.lane.b32.xlu0 %v361, 112
      %v1295 = vpop.permute.xlu0 %1294
      %1296 = vrot.lane.b32.xlu0 %v364, 112
      %v1297 = vpop.permute.xlu0 %1296
      %1298 = vrot.lane.b32.xlu0 %v366, 112
      %v1299 = vpop.permute.xlu0 %1298
      %1300 = vrot.lane.b32.xlu0 %v369, 112
      %v1301 = vpop.permute.xlu0 %1300
      %1302 = vrot.lane.b32.xlu0 %v371, 112
      %v1303 = vpop.permute.xlu0 %1302
      %1304 = vrot.lane.b32.xlu0 %v374, 112
      %v1305 = vpop.permute.xlu0 %1304
      %1306 = vrot.lane.b32.xlu0 %v376, 112
      %v1307 = vpop.permute.xlu0 %1306
      %1308 = vrot.lane.b32.xlu0 %v379, 112
      %v1309 = vpop.permute.xlu0 %1308
      %1310 = vrot.lane.b32.xlu0 %v381, 112
      %v1311 = vpop.permute.xlu0 %1310
      %1312 = vrot.lane.b32.xlu0 %v384, 112
      %v1313 = vpop.permute.xlu0 %1312
      %1314 = vrot.lane.b32.xlu0 %v386, 112
      %v1315 = vpop.permute.xlu0 %1314
      %1316 = vrot.lane.b32.xlu0 %v389, 112
      %v1317 = vpop.permute.xlu0 %1316
      %1318 = vrot.lane.b32.xlu0 %v391, 112
      %v1319 = vpop.permute.xlu0 %1318
      %1320 = vrot.lane.b32.xlu0 %v394, 112
      %v1321 = vpop.permute.xlu0 %1320
      %1322 = vrot.lane.b32.xlu0 %v396, 112
      %v1323 = vpop.permute.xlu0 %1322
      %1324 = vrot.lane.b32.xlu0 %v399, 112
      %v1325 = vpop.permute.xlu0 %1324
      %1326 = vrot.lane.b32.xlu0 %v401, 112
      %v1327 = vpop.permute.xlu0 %1326
      %1328 = vrot.lane.b32.xlu0 0.0, 112
      %v1329 = vpop.permute.xlu0 %1328
      %v1361 = vadd.f32 %v324, %v1269
      %v1362 = vadd.f32 %v326, %v1271
      %v1363 = vadd.f32 %v329, %v1273
      %v1364 = vadd.f32 %v331, %v1275
      %v1365 = vadd.f32 %v334, %v1277
      %v1366 = vadd.f32 %v336, %v1279
      %v1367 = vadd.f32 %v339, %v1281
      %v1368 = vadd.f32 %v341, %v1283
      %v1369 = vadd.f32 %v344, %v1285
      %v1370 = vadd.f32 %v346, %v1287
      %v1371 = vadd.f32 %v349, %v1289
      %v1372 = vadd.f32 %v351, %v1291
      %v1373 = vadd.f32 %v354, %v1293
      %v1374 = vadd.f32 %v356, %v1295
      %v1375 = vadd.f32 %v359, %v1297
      %v1376 = vadd.f32 %v361, %v1299
      %v1377 = vadd.f32 %v364, %v1301
      %v1378 = vadd.f32 %v366, %v1303
      %v1379 = vadd.f32 %v369, %v1305
      %v1380 = vadd.f32 %v371, %v1307
      %v1381 = vadd.f32 %v374, %v1309
      %v1382 = vadd.f32 %v376, %v1311
      %v1383 = vadd.f32 %v379, %v1313
      %v1384 = vadd.f32 %v381, %v1315
      %v1385 = vadd.f32 %v384, %v1317
      %v1386 = vadd.f32 %v386, %v1319
      %v1387 = vadd.f32 %v389, %v1321
      %v1388 = vadd.f32 %v391, %v1323
      %v1389 = vadd.f32 %v394, %v1325
      %v1390 = vadd.f32 %v396, %v1327
      %v1391 = vadd.f32 %v399, %v1329
      %v1392 = vadd.f32 %v401, %v1329
      %1393 = vrot.lane.b32.xlu0 %v1045, 120
      %v1394 = vpop.permute.xlu0 %1393
      %1395 = vrot.lane.b32.xlu0 %v1046, 120
      %v1396 = vpop.permute.xlu0 %1395
      %1397 = vrot.lane.b32.xlu0 %v1047, 120
      %v1398 = vpop.permute.xlu0 %1397
      %1399 = vrot.lane.b32.xlu0 %v1048, 120
      %v1400 = vpop.permute.xlu0 %1399
      %1401 = vrot.lane.b32.xlu0 %v1049, 120
      %v1402 = vpop.permute.xlu0 %1401
      %1403 = vrot.lane.b32.xlu0 %v1050, 120
      %v1404 = vpop.permute.xlu0 %1403
      %1405 = vrot.lane.b32.xlu0 %v1051, 120
      %v1406 = vpop.permute.xlu0 %1405
      %1407 = vrot.lane.b32.xlu0 %v1052, 120
      %v1408 = vpop.permute.xlu0 %1407
      %1409 = vrot.lane.b32.xlu0 %v1053, 120
      %v1410 = vpop.permute.xlu0 %1409
      %1411 = vrot.lane.b32.xlu0 %v1054, 120
      %v1412 = vpop.permute.xlu0 %1411
      %1413 = vrot.lane.b32.xlu0 %v1055, 120
      %v1414 = vpop.permute.xlu0 %1413
      %1415 = vrot.lane.b32.xlu0 %v1056, 120
      %v1416 = vpop.permute.xlu0 %1415
      %1417 = vrot.lane.b32.xlu0 %v1057, 120
      %v1418 = vpop.permute.xlu0 %1417
      %1419 = vrot.lane.b32.xlu0 %v1058, 120
      %v1420 = vpop.permute.xlu0 %1419
      %1421 = vrot.lane.b32.xlu0 %v1059, 120
      %v1422 = vpop.permute.xlu0 %1421
      %1423 = vrot.lane.b32.xlu0 %v1060, 120
      %v1424 = vpop.permute.xlu0 %1423
      %1425 = vrot.lane.b32.xlu0 %v1061, 120
      %v1426 = vpop.permute.xlu0 %1425
      %1427 = vrot.lane.b32.xlu0 %v1062, 120
      %v1428 = vpop.permute.xlu0 %1427
      %1429 = vrot.lane.b32.xlu0 %v1063, 120
      %v1430 = vpop.permute.xlu0 %1429
      %1431 = vrot.lane.b32.xlu0 %v1064, 120
      %v1432 = vpop.permute.xlu0 %1431
      %1433 = vrot.lane.b32.xlu0 %v1065, 120
      %v1434 = vpop.permute.xlu0 %1433
      %1435 = vrot.lane.b32.xlu0 %v1066, 120
      %v1436 = vpop.permute.xlu0 %1435
      %1437 = vrot.lane.b32.xlu0 %v1067, 120
      %v1438 = vpop.permute.xlu0 %1437
      %1439 = vrot.lane.b32.xlu0 %v1068, 120
      %v1440 = vpop.permute.xlu0 %1439
      %1441 = vrot.lane.b32.xlu0 %v1069, 120
      %v1442 = vpop.permute.xlu0 %1441
      %1443 = vrot.lane.b32.xlu0 %v1070, 120
      %v1444 = vpop.permute.xlu0 %1443
      %1445 = vrot.lane.b32.xlu0 %v1071, 120
      %v1446 = vpop.permute.xlu0 %1445
      %1447 = vrot.lane.b32.xlu0 %v1072, 120
      %v1448 = vpop.permute.xlu0 %1447
      %1449 = vrot.lane.b32.xlu0 %v1073, 120
      %v1450 = vpop.permute.xlu0 %1449
      %1451 = vrot.lane.b32.xlu0 %v1074, 120
      %v1452 = vpop.permute.xlu0 %1451
      %1453 = vrot.lane.b32.xlu0 %v1075, 120
      %v1454 = vpop.permute.xlu0 %1453
      %1455 = vrot.lane.b32.xlu0 %v1076, 120
      %v1456 = vpop.permute.xlu0 %1455
      %v1489 = vadd.f32 %v324, %v1394
      %v1490 = vadd.f32 %v326, %v1396
      %v1491 = vadd.f32 %v329, %v1398
      %v1492 = vadd.f32 %v331, %v1400
      %v1493 = vadd.f32 %v334, %v1402
      %v1494 = vadd.f32 %v336, %v1404
      %v1495 = vadd.f32 %v339, %v1406
      %v1496 = vadd.f32 %v341, %v1408
      %v1497 = vadd.f32 %v344, %v1410
      %v1498 = vadd.f32 %v346, %v1412
      %v1499 = vadd.f32 %v349, %v1414
      %v1500 = vadd.f32 %v351, %v1416
      %v1501 = vadd.f32 %v354, %v1418
      %v1502 = vadd.f32 %v356, %v1420
      %v1503 = vadd.f32 %v359, %v1422
      %v1504 = vadd.f32 %v361, %v1424
      %v1505 = vadd.f32 %v364, %v1426
      %v1506 = vadd.f32 %v366, %v1428
      %v1507 = vadd.f32 %v369, %v1430
      %v1508 = vadd.f32 %v371, %v1432
      %v1509 = vadd.f32 %v374, %v1434
      %v1510 = vadd.f32 %v376, %v1436
      %v1511 = vadd.f32 %v379, %v1438
      %v1512 = vadd.f32 %v381, %v1440
      %v1513 = vadd.f32 %v384, %v1442
      %v1514 = vadd.f32 %v386, %v1444
      %v1515 = vadd.f32 %v389, %v1446
      %v1516 = vadd.f32 %v391, %v1448
      %v1517 = vadd.f32 %v394, %v1450
      %v1518 = vadd.f32 %v396, %v1452
      %v1519 = vadd.f32 %v399, %v1454
      %v1520 = vadd.f32 %v401, %v1456
      %v1521 = vadd.f32 %v1489, %v1269
      %v1522 = vadd.f32 %v1490, %v1271
      %v1523 = vadd.f32 %v1491, %v1273
      %v1524 = vadd.f32 %v1492, %v1275
      %v1525 = vadd.f32 %v1493, %v1277
      %v1526 = vadd.f32 %v1494, %v1279
      %v1527 = vadd.f32 %v1495, %v1281
      %v1528 = vadd.f32 %v1496, %v1283
      %v1529 = vadd.f32 %v1497, %v1285
      %v1530 = vadd.f32 %v1498, %v1287
      %v1531 = vadd.f32 %v1499, %v1289
      %v1532 = vadd.f32 %v1500, %v1291
      %v1533 = vadd.f32 %v1501, %v1293
      %v1534 = vadd.f32 %v1502, %v1295
      %v1535 = vadd.f32 %v1503, %v1297
      %v1536 = vadd.f32 %v1504, %v1299
      %v1537 = vadd.f32 %v1505, %v1301
      %v1538 = vadd.f32 %v1506, %v1303
      %v1539 = vadd.f32 %v1507, %v1305
      %v1540 = vadd.f32 %v1508, %v1307
      %v1541 = vadd.f32 %v1509, %v1309
      %v1542 = vadd.f32 %v1510, %v1311
      %v1543 = vadd.f32 %v1511, %v1313
      %v1544 = vadd.f32 %v1512, %v1315
      %v1545 = vadd.f32 %v1513, %v1317
      %v1546 = vadd.f32 %v1514, %v1319
      %v1547 = vadd.f32 %v1515, %v1321
      %v1548 = vadd.f32 %v1516, %v1323
      %v1549 = vadd.f32 %v1517, %v1325
      %v1550 = vadd.f32 %v1518, %v1327
      %v1551 = vadd.f32 %v1519, %v1329
      %v1552 = vadd.f32 %v1520, %v1329
      %1583 = vrot.lane.b32.xlu0 %v1077, 108
      %v1584 = vpop.permute.xlu0 %1583
      %1585 = vrot.lane.b32.xlu0 %v1078, 108
      %v1586 = vpop.permute.xlu0 %1585
      %1587 = vrot.lane.b32.xlu0 %v1079, 108
      %v1588 = vpop.permute.xlu0 %1587
      %1589 = vrot.lane.b32.xlu0 %v1080, 108
      %v1590 = vpop.permute.xlu0 %1589
      %1591 = vrot.lane.b32.xlu0 %v1081, 108
      %v1592 = vpop.permute.xlu0 %1591
      %1593 = vrot.lane.b32.xlu0 %v1082, 108
      %v1594 = vpop.permute.xlu0 %1593
      %1595 = vrot.lane.b32.xlu0 %v1083, 108
      %v1596 = vpop.permute.xlu0 %1595
      %1597 = vrot.lane.b32.xlu0 %v1084, 108
      %v1598 = vpop.permute.xlu0 %1597
      %1599 = vrot.lane.b32.xlu0 %v1085, 108
      %v1600 = vpop.permute.xlu0 %1599
      %1601 = vrot.lane.b32.xlu0 %v1086, 108
      %v1602 = vpop.permute.xlu0 %1601
      %1603 = vrot.lane.b32.xlu0 %v1087, 108
      %v1604 = vpop.permute.xlu0 %1603
      %1605 = vrot.lane.b32.xlu0 %v1088, 108
      %v1606 = vpop.permute.xlu0 %1605
      %1607 = vrot.lane.b32.xlu0 %v1089, 108
      %v1608 = vpop.permute.xlu0 %1607
      %1609 = vrot.lane.b32.xlu0 %v1090, 108
      %v1610 = vpop.permute.xlu0 %1609
      %1611 = vrot.lane.b32.xlu0 %v1091, 108
      %v1612 = vpop.permute.xlu0 %1611
      %1613 = vrot.lane.b32.xlu0 %v1092, 108
      %v1614 = vpop.permute.xlu0 %1613
      %1615 = vrot.lane.b32.xlu0 %v1093, 108
      %v1616 = vpop.permute.xlu0 %1615
      %1617 = vrot.lane.b32.xlu0 %v1094, 108
      %v1618 = vpop.permute.xlu0 %1617
      %1619 = vrot.lane.b32.xlu0 %v1095, 108
      %v1620 = vpop.permute.xlu0 %1619
      %1621 = vrot.lane.b32.xlu0 %v1096, 108
      %v1622 = vpop.permute.xlu0 %1621
      %1623 = vrot.lane.b32.xlu0 %v1097, 108
      %v1624 = vpop.permute.xlu0 %1623
      %1625 = vrot.lane.b32.xlu0 %v1098, 108
      %v1626 = vpop.permute.xlu0 %1625
      %1627 = vrot.lane.b32.xlu0 %v1099, 108
      %v1628 = vpop.permute.xlu0 %1627
      %1629 = vrot.lane.b32.xlu0 %v1100, 108
      %v1630 = vpop.permute.xlu0 %1629
      %1631 = vrot.lane.b32.xlu0 %v1101, 108
      %v1632 = vpop.permute.xlu0 %1631
      %1633 = vrot.lane.b32.xlu0 %v1102, 108
      %v1634 = vpop.permute.xlu0 %1633
      %1635 = vrot.lane.b32.xlu0 %v1103, 108
      %v1636 = vpop.permute.xlu0 %1635
      %1637 = vrot.lane.b32.xlu0 %v1104, 108
      %v1638 = vpop.permute.xlu0 %1637
      %1639 = vrot.lane.b32.xlu0 %v1105, 108
      %v1640 = vpop.permute.xlu0 %1639
      %1641 = vrot.lane.b32.xlu0 %v1106, 108
      %v1642 = vpop.permute.xlu0 %1641
      %1643 = vrot.lane.b32.xlu0 0.0, 108
      %v1644 = vpop.permute.xlu0 %1643
      %v1676 = vadd.f32 %v1521, %v1584
      %v1677 = vadd.f32 %v1522, %v1586
      %v1678 = vadd.f32 %v1523, %v1588
      %v1679 = vadd.f32 %v1524, %v1590
      %v1680 = vadd.f32 %v1525, %v1592
      %v1681 = vadd.f32 %v1526, %v1594
      %v1682 = vadd.f32 %v1527, %v1596
      %v1683 = vadd.f32 %v1528, %v1598
      %v1684 = vadd.f32 %v1529, %v1600
      %v1685 = vadd.f32 %v1530, %v1602
      %v1686 = vadd.f32 %v1531, %v1604
      %v1687 = vadd.f32 %v1532, %v1606
      %v1688 = vadd.f32 %v1533, %v1608
      %v1689 = vadd.f32 %v1534, %v1610
      %v1690 = vadd.f32 %v1535, %v1612
      %v1691 = vadd.f32 %v1536, %v1614
      %v1692 = vadd.f32 %v1537, %v1616
      %v1693 = vadd.f32 %v1538, %v1618
      %v1694 = vadd.f32 %v1539, %v1620
      %v1695 = vadd.f32 %v1540, %v1622
      %v1696 = vadd.f32 %v1541, %v1624
      %v1697 = vadd.f32 %v1542, %v1626
      %v1698 = vadd.f32 %v1543, %v1628
      %v1699 = vadd.f32 %v1544, %v1630
      %v1700 = vadd.f32 %v1545, %v1632
      %v1701 = vadd.f32 %v1546, %v1634
      %v1702 = vadd.f32 %v1547, %v1636
      %v1703 = vadd.f32 %v1548, %v1638
      %v1704 = vadd.f32 %v1549, %v1640
      %v1705 = vadd.f32 %v1550, %v1642
      %v1706 = vadd.f32 %v1551, %v1644
      %v1707 = vadd.f32 %v1552, %v1644
      %vm1708 = vcmask 31744
      %v1709 = vsel %vm1708, %v324, %v1235
      %v1710 = vsel %vm1708, %v326, %v1236
      %v1711 = vsel %vm1708, %v329, %v1237
      %v1712 = vsel %vm1708, %v331, %v1238
      %v1713 = vsel %vm1708, %v334, %v1239
      %v1714 = vsel %vm1708, %v336, %v1240
      %v1715 = vsel %vm1708, %v339, %v1241
      %v1716 = vsel %vm1708, %v341, %v1242
      %v1717 = vsel %vm1708, %v344, %v1243
      %v1718 = vsel %vm1708, %v346, %v1244
      %v1719 = vsel %vm1708, %v349, %v1245
      %v1720 = vsel %vm1708, %v351, %v1246
      %v1721 = vsel %vm1708, %v354, %v1247
      %v1722 = vsel %vm1708, %v356, %v1248
      %v1723 = vsel %vm1708, %v359, %v1249
      %v1724 = vsel %vm1708, %v361, %v1250
      %v1725 = vsel %vm1708, %v364, %v1251
      %v1726 = vsel %vm1708, %v366, %v1252
      %v1727 = vsel %vm1708, %v369, %v1253
      %v1728 = vsel %vm1708, %v371, %v1254
      %v1729 = vsel %vm1708, %v374, %v1255
      %v1730 = vsel %vm1708, %v376, %v1256
      %v1731 = vsel %vm1708, %v379, %v1257
      %v1732 = vsel %vm1708, %v381, %v1258
      %v1733 = vsel %vm1708, %v384, %v1259
      %v1734 = vsel %vm1708, %v386, %v1260
      %v1735 = vsel %vm1708, %v389, %v1261
      %v1736 = vsel %vm1708, %v391, %v1262
      %v1737 = vsel %vm1708, %v394, %v1263
      %v1738 = vsel %vm1708, %v396, %v1264
      %v1739 = vsel %vm1708, %v399, %v1265
      %v1740 = vsel %vm1708, %v401, %v1266
      %vm1741 = vcmask 64512
      %v1742 = vsel %vm1741, %v1709, %v1361
      %v1743 = vsel %vm1741, %v1710, %v1362
      %v1744 = vsel %vm1741, %v1711, %v1363
      %v1745 = vsel %vm1741, %v1712, %v1364
      %v1746 = vsel %vm1741, %v1713, %v1365
      %v1747 = vsel %vm1741, %v1714, %v1366
      %v1748 = vsel %vm1741, %v1715, %v1367
      %v1749 = vsel %vm1741, %v1716, %v1368
      %v1750 = vsel %vm1741, %v1717, %v1369
      %v1751 = vsel %vm1741, %v1718, %v1370
      %v1752 = vsel %vm1741, %v1719, %v1371
      %v1753 = vsel %vm1741, %v1720, %v1372
      %v1754 = vsel %vm1741, %v1721, %v1373
      %v1755 = vsel %vm1741, %v1722, %v1374
      %v1756 = vsel %vm1741, %v1723, %v1375
      %v1757 = vsel %vm1741, %v1724, %v1376
      %v1758 = vsel %vm1741, %v1725, %v1377
      %v1759 = vsel %vm1741, %v1726, %v1378
      %v1760 = vsel %vm1741, %v1727, %v1379
      %v1761 = vsel %vm1741, %v1728, %v1380
      %v1762 = vsel %vm1741, %v1729, %v1381
      %v1763 = vsel %vm1741, %v1730, %v1382
      %v1764 = vsel %vm1741, %v1731, %v1383
      %v1765 = vsel %vm1741, %v1732, %v1384
      %v1766 = vsel %vm1741, %v1733, %v1385
      %v1767 = vsel %vm1741, %v1734, %v1386
      %v1768 = vsel %vm1741, %v1735, %v1387
      %v1769 = vsel %vm1741, %v1736, %v1388
      %v1770 = vsel %vm1741, %v1737, %v1389
      %v1771 = vsel %vm1741, %v1738, %v1390
      %v1772 = vsel %vm1741, %v1739, %v1391
      %v1773 = vsel %vm1741, %v1740, %v1392
      %vm1774 = vcmask 97280
      %v1775 = vsel %vm1774, %v1742, %v1676
      %v1776 = vsel %vm1774, %v1743, %v1677
      %v1777 = vsel %vm1774, %v1744, %v1678
      %v1778 = vsel %vm1774, %v1745, %v1679
      %v1779 = vsel %vm1774, %v1746, %v1680
      %v1780 = vsel %vm1774, %v1747, %v1681
      %v1781 = vsel %vm1774, %v1748, %v1682
      %v1782 = vsel %vm1774, %v1749, %v1683
      %v1783 = vsel %vm1774, %v1750, %v1684
      %v1784 = vsel %vm1774, %v1751, %v1685
      %v1785 = vsel %vm1774, %v1752, %v1686
      %v1786 = vsel %vm1774, %v1753, %v1687
      %v1787 = vsel %vm1774, %v1754, %v1688
      %v1788 = vsel %vm1774, %v1755, %v1689
      %v1789 = vsel %vm1774, %v1756, %v1690
      %v1790 = vsel %vm1774, %v1757, %v1691
      %v1791 = vsel %vm1774, %v1758, %v1692
      %v1792 = vsel %vm1774, %v1759, %v1693
      %v1793 = vsel %vm1774, %v1760, %v1694
      %v1794 = vsel %vm1774, %v1761, %v1695
      %v1795 = vsel %vm1774, %v1762, %v1696
      %v1796 = vsel %vm1774, %v1763, %v1697
      %v1797 = vsel %vm1774, %v1764, %v1698
      %v1798 = vsel %vm1774, %v1765, %v1699
      %v1799 = vsel %vm1774, %v1766, %v1700
      %v1800 = vsel %vm1774, %v1767, %v1701
      %v1801 = vsel %vm1774, %v1768, %v1702
      %v1802 = vsel %vm1774, %v1769, %v1703
      %v1803 = vsel %vm1774, %v1770, %v1704
      %v1804 = vsel %vm1774, %v1771, %v1705
      %v1805 = vsel %vm1774, %v1772, %v1706
      %v1806 = vsel %vm1774, %v1773, %v1707
      %v1807 = vsel %vm265, %v1775, 0.0
      %v1808 = vsel %vm265, %v1776, 0.0
      %v1809 = vadd.f32 %v1807, %v1808
      %v1810 = vsel %vm265, %v1777, 0.0
      %v1811 = vadd.f32 %v1809, %v1810
      %v1812 = vsel %vm265, %v1778, 0.0
      %v1813 = vadd.f32 %v1811, %v1812
      %v1814 = vsel %vm265, %v1779, 0.0
      %v1815 = vadd.f32 %v1813, %v1814
      %v1816 = vsel %vm265, %v1780, 0.0
      %v1817 = vadd.f32 %v1815, %v1816
      %v1818 = vsel %vm265, %v1781, 0.0
      %v1819 = vadd.f32 %v1817, %v1818
      %v1820 = vsel %vm265, %v1782, 0.0
      %v1821 = vadd.f32 %v1819, %v1820
      %v1822 = vsel %vm265, %v1783, 0.0
      %v1823 = vadd.f32 %v1821, %v1822
      %v1824 = vsel %vm265, %v1784, 0.0
      %v1825 = vadd.f32 %v1823, %v1824
      %v1826 = vsel %vm265, %v1785, 0.0
      %v1827 = vadd.f32 %v1825, %v1826
      %v1828 = vsel %vm265, %v1786, 0.0
      %v1829 = vadd.f32 %v1827, %v1828
      %v1830 = vsel %vm265, %v1787, 0.0
      %v1831 = vadd.f32 %v1829, %v1830
      %v1832 = vsel %vm265, %v1788, 0.0
      %v1833 = vadd.f32 %v1831, %v1832
      %v1834 = vsel %vm265, %v1789, 0.0
      %v1835 = vadd.f32 %v1833, %v1834
      %v1836 = vsel %vm265, %v1790, 0.0
      %v1837 = vadd.f32 %v1835, %v1836
      %v1838 = vsel %vm265, %v1791, 0.0
      %v1839 = vadd.f32 %v1837, %v1838
      %v1840 = vsel %vm265, %v1792, 0.0
      %v1841 = vadd.f32 %v1839, %v1840
      %v1842 = vsel %vm265, %v1793, 0.0
      %v1843 = vadd.f32 %v1841, %v1842
      %v1844 = vsel %vm265, %v1794, 0.0
      %v1845 = vadd.f32 %v1843, %v1844
      %v1846 = vsel %vm265, %v1795, 0.0
      %v1847 = vadd.f32 %v1845, %v1846
      %v1848 = vsel %vm265, %v1796, 0.0
      %v1849 = vadd.f32 %v1847, %v1848
      %v1850 = vsel %vm265, %v1797, 0.0
      %v1851 = vadd.f32 %v1849, %v1850
      %v1852 = vsel %vm265, %v1798, 0.0
      %v1853 = vadd.f32 %v1851, %v1852
      %v1854 = vsel %vm265, %v1799, 0.0
      %v1855 = vadd.f32 %v1853, %v1854
      %v1856 = vsel %vm265, %v1800, 0.0
      %v1857 = vadd.f32 %v1855, %v1856
      %v1858 = vsel %vm265, %v1801, 0.0
      %v1859 = vadd.f32 %v1857, %v1858
      %v1860 = vsel %vm265, %v1802, 0.0
      %v1861 = vadd.f32 %v1859, %v1860
      %v1862 = vsel %vm265, %v1803, 0.0
      %v1863 = vadd.f32 %v1861, %v1862
      %v1864 = vsel %vm265, %v1804, 0.0
      %v1865 = vadd.f32 %v1863, %v1864
      %v1866 = vsel %vm265, %v1805, 0.0
      %v1867 = vadd.f32 %v1865, %v1866
      %v1868 = vsel %vm265, %v1806, 0.0
      %v1869 = vadd.f32 %v1867, %v1868
      %v1870 = vrot.slane %v1869, 4
      %v1871 = vadd.f32 %v1869, %v1870
      %v1872 = vrot.slane %v1871, 2
      %v1873 = vadd.f32 %v1871, %v1872
      %v1874 = vrot.slane %v1873, 1
      %v1875 = vadd.f32 %v1873, %v1874
      %v1876 = vmul.f32 %v1775, %v1775
      %v1877 = vmul.f32 %v1776, %v1776
      %v1878 = vmul.f32 %v1777, %v1777
      %v1879 = vmul.f32 %v1778, %v1778
      %v1880 = vmul.f32 %v1779, %v1779
      %v1881 = vmul.f32 %v1780, %v1780
      %v1882 = vmul.f32 %v1781, %v1781
      %v1883 = vmul.f32 %v1782, %v1782
      %v1884 = vmul.f32 %v1783, %v1783
      %v1885 = vmul.f32 %v1784, %v1784
      %v1886 = vmul.f32 %v1785, %v1785
      %v1887 = vmul.f32 %v1786, %v1786
      %v1888 = vmul.f32 %v1787, %v1787
      %v1889 = vmul.f32 %v1788, %v1788
      %v1890 = vmul.f32 %v1789, %v1789
      %v1891 = vmul.f32 %v1790, %v1790
      %v1892 = vmul.f32 %v1791, %v1791
      %v1893 = vmul.f32 %v1792, %v1792
      %v1894 = vmul.f32 %v1793, %v1793
      %v1895 = vmul.f32 %v1794, %v1794
      %v1896 = vmul.f32 %v1795, %v1795
      %v1897 = vmul.f32 %v1796, %v1796
      %v1898 = vmul.f32 %v1797, %v1797
      %v1899 = vmul.f32 %v1798, %v1798
      %v1900 = vmul.f32 %v1799, %v1799
      %v1901 = vmul.f32 %v1800, %v1800
      %v1902 = vmul.f32 %v1801, %v1801
      %v1903 = vmul.f32 %v1802, %v1802
      %v1904 = vmul.f32 %v1803, %v1803
      %v1905 = vmul.f32 %v1804, %v1804
      %v1906 = vmul.f32 %v1805, %v1805
      %v1907 = vmul.f32 %v1806, %v1806
      %v1908 = vsel %vm265, %v1876, 0.0
      %v1909 = vsel %vm265, %v1877, 0.0
      %v1910 = vadd.f32 %v1908, %v1909
      %v1911 = vsel %vm265, %v1878, 0.0
      %v1912 = vadd.f32 %v1910, %v1911
      %v1913 = vsel %vm265, %v1879, 0.0
      %v1914 = vadd.f32 %v1912, %v1913
      %v1915 = vsel %vm265, %v1880, 0.0
      %v1916 = vadd.f32 %v1914, %v1915
      %v1917 = vsel %vm265, %v1881, 0.0
      %v1918 = vadd.f32 %v1916, %v1917
      %v1919 = vsel %vm265, %v1882, 0.0
      %v1920 = vadd.f32 %v1918, %v1919
      %v1921 = vsel %vm265, %v1883, 0.0
      %v1922 = vadd.f32 %v1920, %v1921
      %v1923 = vsel %vm265, %v1884, 0.0
      %v1924 = vadd.f32 %v1922, %v1923
      %v1925 = vsel %vm265, %v1885, 0.0
      %v1926 = vadd.f32 %v1924, %v1925
      %v1927 = vsel %vm265, %v1886, 0.0
      %v1928 = vadd.f32 %v1926, %v1927
      %v1929 = vsel %vm265, %v1887, 0.0
      %v1930 = vadd.f32 %v1928, %v1929
      %v1931 = vsel %vm265, %v1888, 0.0
      %v1932 = vadd.f32 %v1930, %v1931
      %v1933 = vsel %vm265, %v1889, 0.0
      %v1934 = vadd.f32 %v1932, %v1933
      %v1935 = vsel %vm265, %v1890, 0.0
      %v1936 = vadd.f32 %v1934, %v1935
      %v1937 = vsel %vm265, %v1891, 0.0
      %v1938 = vadd.f32 %v1936, %v1937
      %v1939 = vsel %vm265, %v1892, 0.0
      %v1940 = vadd.f32 %v1938, %v1939
      %v1941 = vsel %vm265, %v1893, 0.0
      %v1942 = vadd.f32 %v1940, %v1941
      %v1943 = vsel %vm265, %v1894, 0.0
      %v1944 = vadd.f32 %v1942, %v1943
      %v1945 = vsel %vm265, %v1895, 0.0
      %v1946 = vadd.f32 %v1944, %v1945
      %v1947 = vsel %vm265, %v1896, 0.0
      %v1948 = vadd.f32 %v1946, %v1947
      %v1949 = vsel %vm265, %v1897, 0.0
      %v1950 = vadd.f32 %v1948, %v1949
      %v1951 = vsel %vm265, %v1898, 0.0
      %v1952 = vadd.f32 %v1950, %v1951
      %v1953 = vsel %vm265, %v1899, 0.0
      %v1954 = vadd.f32 %v1952, %v1953
      %v1955 = vsel %vm265, %v1900, 0.0
      %v1956 = vadd.f32 %v1954, %v1955
      %v1957 = vsel %vm265, %v1901, 0.0
      %v1958 = vadd.f32 %v1956, %v1957
      %v1959 = vsel %vm265, %v1902, 0.0
      %v1960 = vadd.f32 %v1958, %v1959
      %v1961 = vsel %vm265, %v1903, 0.0
      %v1962 = vadd.f32 %v1960, %v1961
      %v1963 = vsel %vm265, %v1904, 0.0
      %v1964 = vadd.f32 %v1962, %v1963
      %v1965 = vsel %vm265, %v1905, 0.0
      %v1966 = vadd.f32 %v1964, %v1965
      %v1967 = vsel %vm265, %v1906, 0.0
      %v1968 = vadd.f32 %v1966, %v1967
      %v1969 = vsel %vm265, %v1907, 0.0
      %v1970 = vadd.f32 %v1968, %v1969
      %v1971 = vrot.slane %v1970, 4
      %v1972 = vadd.f32 %v1970, %v1971
      %v1973 = vrot.slane %v1972, 2
      %v1974 = vadd.f32 %v1972, %v1973
      %v1975 = vrot.slane %v1974, 1
      %v1976 = vadd.f32 %v1974, %v1975
      %1978 = vrot.lane.b32.xlu0 %v1875, 124
      %v1979 = vpop.permute.xlu0 %1978
      %v1981 = vadd.f32 %v1875, %v1979
      %1982 = vrot.lane.b32.xlu0 %v1875, 120
      %v1983 = vpop.permute.xlu0 %1982
      %v1985 = vadd.f32 %v1981, %v1983
      %1986 = vrot.lane.b32.xlu0 %v1875, 116
      %v1987 = vpop.permute.xlu0 %1986
      %v1989 = vadd.f32 %v1985, %v1987
      %1991 = vrot.lane.b32.xlu0 %v1976, 124
      %v1992 = vpop.permute.xlu0 %1991
      %v1994 = vadd.f32 %v1976, %v1992
      %1995 = vrot.lane.b32.xlu0 %v1976, 120
      %v1996 = vpop.permute.xlu0 %1995
      %v1998 = vadd.f32 %v1994, %v1996
      %1999 = vrot.lane.b32.xlu0 %v1976, 116
      %v2000 = vpop.permute.xlu0 %1999
      %v2002 = vadd.f32 %v1998, %v2000
      %v2003 = vrcp.pop 1024.0
      %v2004 = vmul.f32 1024.0, %v2003
      %v2005 = vsub.f32 1.0, %v2004
      %v2006 = vmul.f32 %v2003, %v2005
      %v2007 = vadd.f32 %v2003, %v2006
      %vm2008 = vweird.f32 %v2003
      %v2009 = vsel %vm2008, %v2003, %v2007
      %v2010 = vmul.f32 %v1989, %v2009
      %v2011 = vmul.f32 %v2002, %v2009
      %v2012 = vmul.f32 %v2010, %v2010
      %v2013 = vsub.f32 %v2011, %v2012
      %v2014 = vmax.f32 %v2013, 0.0
      %v2015 = vadd.f32 %v2014, 1e-05
      %v2016 = vrsqrt.pop %v2015
      %v2017 = vmul.f32 %v2016, %v2015
      %v2018 = vmul.f32 %v2017, %v2016
      %v2019 = vmul.f32 0.5, %v2018
      %v2020 = vsub.f32 1.5, %v2019
      %v2021 = vmul.f32 %v2016, %v2020
      %vm2022 = vweird.f32 %v2015
      %vm2023 = vweird.f32 %v2016
      %vm2024 = vmor %vm2022, %vm2023
      %v2025 = vsel %vm2024, %v2016, %v2021
      %2027 = vrot.lane.b32.xlu0 %v2025, 4
      %v2028 = vpop.permute.xlu0 %2027
      %2030 = vrot.lane.b32.xlu0 %v2025, 8
      %v2031 = vpop.permute.xlu0 %2030
      %2033 = vrot.lane.b32.xlu0 %v2025, 12
      %v2034 = vpop.permute.xlu0 %2033
      %v2036 = vsel %vm1708, %v2025, %v2028
      %v2037 = vsel %vm1741, %v2036, %v2031
      %v2038 = vsel %vm1774, %v2037, %v2034
      %v2039 = vmul.f32 %v2010, %v2025
      %2041 = vrot.lane.b32.xlu0 %v2039, 4
      %v2042 = vpop.permute.xlu0 %2041
      %2044 = vrot.lane.b32.xlu0 %v2039, 8
      %v2045 = vpop.permute.xlu0 %2044
      %2047 = vrot.lane.b32.xlu0 %v2039, 12
      %v2048 = vpop.permute.xlu0 %2047
      %v2050 = vsel %vm1708, %v2039, %v2042
      %v2051 = vsel %vm1741, %v2050, %v2045
      %v2052 = vsel %vm1774, %v2051, %v2048
      %v2053 = vperm.slane %v2038, 0
      %v2054 = vmul.f32 %v1775, %v2053
      %v2055 = vmul.f32 %v1776, %v2053
      %v2056 = vmul.f32 %v1777, %v2053
      %v2057 = vmul.f32 %v1778, %v2053
      %v2058 = vmul.f32 %v1779, %v2053
      %v2059 = vmul.f32 %v1780, %v2053
      %v2060 = vmul.f32 %v1781, %v2053
      %v2061 = vmul.f32 %v1782, %v2053
      %v2062 = vmul.f32 %v1783, %v2053
      %v2063 = vmul.f32 %v1784, %v2053
      %v2064 = vmul.f32 %v1785, %v2053
      %v2065 = vmul.f32 %v1786, %v2053
      %v2066 = vmul.f32 %v1787, %v2053
      %v2067 = vmul.f32 %v1788, %v2053
      %v2068 = vmul.f32 %v1789, %v2053
      %v2069 = vmul.f32 %v1790, %v2053
      %v2070 = vmul.f32 %v1791, %v2053
      %v2071 = vmul.f32 %v1792, %v2053
      %v2072 = vmul.f32 %v1793, %v2053
      %v2073 = vmul.f32 %v1794, %v2053
      %v2074 = vmul.f32 %v1795, %v2053
      %v2075 = vmul.f32 %v1796, %v2053
      %v2076 = vmul.f32 %v1797, %v2053
      %v2077 = vmul.f32 %v1798, %v2053
      %v2078 = vmul.f32 %v1799, %v2053
      %v2079 = vmul.f32 %v1800, %v2053
      %v2080 = vmul.f32 %v1801, %v2053
      %v2081 = vmul.f32 %v1802, %v2053
      %v2082 = vmul.f32 %v1803, %v2053
      %v2083 = vmul.f32 %v1804, %v2053
      %v2084 = vmul.f32 %v1805, %v2053
      %v2085 = vmul.f32 %v1806, %v2053
      %v2086 = vperm.slane %v2052, 0
      %v2087 = vsub.f32 %v2054, %v2086
      %v2088 = vsub.f32 %v2055, %v2086
      %v2089 = vsub.f32 %v2056, %v2086
      %v2090 = vsub.f32 %v2057, %v2086
      %v2091 = vsub.f32 %v2058, %v2086
      %v2092 = vsub.f32 %v2059, %v2086
      %v2093 = vsub.f32 %v2060, %v2086
      %v2094 = vsub.f32 %v2061, %v2086
      %v2095 = vsub.f32 %v2062, %v2086
      %v2096 = vsub.f32 %v2063, %v2086
      %v2097 = vsub.f32 %v2064, %v2086
      %v2098 = vsub.f32 %v2065, %v2086
      %v2099 = vsub.f32 %v2066, %v2086
      %v2100 = vsub.f32 %v2067, %v2086
      %v2101 = vsub.f32 %v2068, %v2086
      %v2102 = vsub.f32 %v2069, %v2086
      %v2103 = vsub.f32 %v2070, %v2086
      %v2104 = vsub.f32 %v2071, %v2086
      %v2105 = vsub.f32 %v2072, %v2086
      %v2106 = vsub.f32 %v2073, %v2086
      %v2107 = vsub.f32 %v2074, %v2086
      %v2108 = vsub.f32 %v2075, %v2086
      %v2109 = vsub.f32 %v2076, %v2086
      %v2110 = vsub.f32 %v2077, %v2086
      %v2111 = vsub.f32 %v2078, %v2086
      %v2112 = vsub.f32 %v2079, %v2086
      %v2113 = vsub.f32 %v2080, %v2086
      %v2114 = vsub.f32 %v2081, %v2086
      %v2115 = vsub.f32 %v2082, %v2086
      %v2116 = vsub.f32 %v2083, %v2086
      %v2117 = vsub.f32 %v2084, %v2086
      %v2118 = vsub.f32 %v2085, %v2086
      %v2119 = vmax.f32 %v2087, 0.0
      %v2120 = vmax.f32 %v2088, 0.0
      %v2121 = vmax.f32 %v2089, 0.0
      %v2122 = vmax.f32 %v2090, 0.0
      %v2123 = vmax.f32 %v2091, 0.0
      %v2124 = vmax.f32 %v2092, 0.0
      %v2125 = vmax.f32 %v2093, 0.0
      %v2126 = vmax.f32 %v2094, 0.0
      %v2127 = vmax.f32 %v2095, 0.0
      %v2128 = vmax.f32 %v2096, 0.0
      %v2129 = vmax.f32 %v2097, 0.0
      %v2130 = vmax.f32 %v2098, 0.0
      %v2131 = vmax.f32 %v2099, 0.0
      %v2132 = vmax.f32 %v2100, 0.0
      %v2133 = vmax.f32 %v2101, 0.0
      %v2134 = vmax.f32 %v2102, 0.0
      %v2135 = vmax.f32 %v2103, 0.0
      %v2136 = vmax.f32 %v2104, 0.0
      %v2137 = vmax.f32 %v2105, 0.0
      %v2138 = vmax.f32 %v2106, 0.0
      %v2139 = vmax.f32 %v2107, 0.0
      %v2140 = vmax.f32 %v2108, 0.0
      %v2141 = vmax.f32 %v2109, 0.0
      %v2142 = vmax.f32 %v2110, 0.0
      %v2143 = vmax.f32 %v2111, 0.0
      %v2144 = vmax.f32 %v2112, 0.0
      %v2145 = vmax.f32 %v2113, 0.0
      %v2146 = vmax.f32 %v2114, 0.0
      %v2147 = vmax.f32 %v2115, 0.0
      %v2148 = vmax.f32 %v2116, 0.0
      %v2149 = vmax.f32 %v2117, 0.0
      %v2150 = vmax.f32 %v2118, 0.0
      %2151 = vst.msk [vmem:[%s143] sm:$0xff] %vm265, %v2119
      %2152 = vst.msk [vmem:[%s143 + $0x8] sm:$0xff] %vm265, %v2120
      %2153 = vst.msk [vmem:[%s143 + $0x10] sm:$0xff] %vm265, %v2121
      %2154 = vst.msk [vmem:[%s143 + $0x18] sm:$0xff] %vm265, %v2122
      %2155 = vst.msk [vmem:[%s143 + $0x20] sm:$0xff] %vm265, %v2123
      %2156 = vst.msk [vmem:[%s143 + $0x28] sm:$0xff] %vm265, %v2124
      %2157 = vst.msk [vmem:[%s143 + $0x30] sm:$0xff] %vm265, %v2125
      %2158 = vst.msk [vmem:[%s143 + $0x38] sm:$0xff] %vm265, %v2126
      %2159 = vst.msk [vmem:[%s143 + $0x40] sm:$0xff] %vm265, %v2127
      %2160 = vst.msk [vmem:[%s143 + $0x48] sm:$0xff] %vm265, %v2128
      %2161 = vst.msk [vmem:[%s143 + $0x50] sm:$0xff] %vm265, %v2129
      %2162 = vst.msk [vmem:[%s143 + $0x58] sm:$0xff] %vm265, %v2130
      %2163 = vst.msk [vmem:[%s143 + $0x60] sm:$0xff] %vm265, %v2131
      %2164 = vst.msk [vmem:[%s143 + $0x68] sm:$0xff] %vm265, %v2132
      %2165 = vst.msk [vmem:[%s143 + $0x70] sm:$0xff] %vm265, %v2133
      %2166 = vst.msk [vmem:[%s143 + $0x78] sm:$0xff] %vm265, %v2134
      %2167 = vst.msk [vmem:[%s143 + $0x80] sm:$0xff] %vm265, %v2135
      %2168 = vst.msk [vmem:[%s143 + $0x88] sm:$0xff] %vm265, %v2136
      %2169 = vst.msk [vmem:[%s143 + $0x90] sm:$0xff] %vm265, %v2137
      %2170 = vst.msk [vmem:[%s143 + $0x98] sm:$0xff] %vm265, %v2138
      %2171 = vst.msk [vmem:[%s143 + $0xa0] sm:$0xff] %vm265, %v2139
      %2172 = vst.msk [vmem:[%s143 + $0xa8] sm:$0xff] %vm265, %v2140
      %2173 = vst.msk [vmem:[%s143 + $0xb0] sm:$0xff] %vm265, %v2141
      %2174 = vst.msk [vmem:[%s143 + $0xb8] sm:$0xff] %vm265, %v2142
      %2175 = vst.msk [vmem:[%s143 + $0xc0] sm:$0xff] %vm265, %v2143
      %2176 = vst.msk [vmem:[%s143 + $0xc8] sm:$0xff] %vm265, %v2144
      %2177 = vst.msk [vmem:[%s143 + $0xd0] sm:$0xff] %vm265, %v2145
      %2178 = vst.msk [vmem:[%s143 + $0xd8] sm:$0xff] %vm265, %v2146
      %2179 = vst.msk [vmem:[%s143 + $0xe0] sm:$0xff] %vm265, %v2147
      %2180 = vst.msk [vmem:[%s143 + $0xe8] sm:$0xff] %vm265, %v2148
      %2181 = vst.msk [vmem:[%s143 + $0xf0] sm:$0xff] %vm265, %v2149
      %2182 = vst.msk [vmem:[%s143 + $0xf8] sm:$0xff] %vm265, %v2150
      %p2183 = scmp.lt.s32.totalorder %s13, 1
      %s2184 = scalar_select %p2183, %s13, 1
      %s2185 = smul.addr %s2184, 32
      %s2186 = smul.addr %s2185, 8
      %s2187 = scalar_lea.vmem %s2, %s2186
      // Predicated region
      $region29: #{tpu_custom_call.1} parent=27 // pred_check
        %p2188 = pneg %p78
      $region30: #{tpu_custom_call.1} parent=27 // pred_check_branch
        %2190 = sbr.rel (%p2188) target = $region32
      $region31: #{tpu_custom_call.1} parent=27 // pred_region
        _
      $region32: #{tpu_custom_call.1} parent=27 // pred_fallthru
        _
    $region28: #{tpu_custom_call.1} parent=5 // pred_fallthru
      _
    %p2191 = scmp.le.s32.totalorder 2, %s8
    // Predicated region
    $region33: #{tpu_custom_call.1} parent=5 // pred_check
      %p2192 = pneg %p2191
    $region34: #{tpu_custom_call.1} parent=5 // pred_check_branch
      %2194 = sbr.rel (%p2192) target = $region36
    $region35: #{tpu_custom_call.1} parent=5 // pred_region
      %s2195 = ssub.s32 %s8, 2
      // Predicated region
      $region37: #{tpu_custom_call.1} parent=35 // pred_check
        %p2196 = pneg %p84
      $region38: #{tpu_custom_call.1} parent=35 // pred_check_branch
        %2198 = sbr.rel (%p2196) target = $region40
      $region39: #{tpu_custom_call.1} parent=35 // pred_region
        %p2199 = scmp.lt.s32.totalorder %s14, 1
        %s2200 = scalar_select %p2199, %s14, 1
        %s2201 = smul.addr %s2200, 32
        %s2202 = smul.addr %s2201, 8
        %s2203 = scalar_lea.vmem %s2, %s2202
      $region40: #{tpu_custom_call.1} parent=35 // pred_fallthru
        _
    $region36: #{tpu_custom_call.1} parent=5 // pred_fallthru
      _
  $region6: #{tpu_custom_call.1} parent=0 // loop_footer
    %s12 = sadd.s32 1, %s8
  $region7: #{tpu_custom_call.1} parent=0 // loop_footer_branch
    %7 = sbr.rel target = $region3
  $region8: #{tpu_custom_call.1} parent=0 // loop_exit
    _

</llo_original>
